<compile_context>
chip_gen: v5e
topology: v5e:2x2
jax: 0.10.0
libtpu: 0.0.40
codegen_flags: <defaults>
</compile_context>

<pallas_src>
import jax
import jax.numpy as jnp
import numpy as np
from jax.experimental import pallas as pl
from jax.experimental.pallas import tpu as pltpu

EPS = 1e-5   # PyTorch BatchNorm1d default eps
LANE = 128
SUB = 8


def _round_up(x, m):
    return ((x + m - 1) // m) * m


def _conv_bn_stats(xin, w_mat, bias, in_scale, in_shift, *, apply_input_relu,
                   true_l, block_l, compute_dtype, y_dtype):
    """One Conv1d(k=3, pad=1) pass in NLC layout, fused with the previous BN(+ReLU).

    xin:      (N, Lr, Cin_p); rows >= true_l are don't-care (masked in-kernel).
    w_mat:    (3*Cin_p, Cout_p) per-tap stacked weights (compute_dtype).
    bias:     (1, Cout_p) f32.
    in_scale/in_shift: (1, Cin_p) per-channel affine applied (with optional ReLU)
        to the input tiles before convolving.
    Returns:
      y:    (N, Lr, Cout_p) y_dtype raw conv output (pre-BN; rows >= true_l garbage).
      ssum: (N, 1, Cout_p) f32 per-batch channel sums over valid rows.
      ssq:  (N, 1, Cout_p) f32 per-batch channel sum-of-squares over valid rows.
    """
    N, Lr, cin_p = xin.shape
    cout_p = w_mat.shape[1]
    tl = block_l
    nt = Lr // tl
    tl8 = tl // SUB
    last_blk8 = Lr // SUB - 1

    def kernel(body_ref, head_ref, tail_ref, w_ref, b_ref, sc_ref, sh_ref,
               y_ref, ssum_ref, ssq_ref, win_ref):
        i = pl.program_id(1)
        base = i * tl
        sc = sc_ref[...]                      # (1, Cin_p) f32
        sh = sh_ref[...]

        def xform(v, start):
            # Per-channel affine (+ optional ReLU) and zero-fill of rows outside
            # [0, true_l): implements the conv zero-padding and masks the
            # length-padding / clamped halo blocks.  Math kept in f32 (safe on
            # v5e which has no bf16 VPU).
            v = v.astype(jnp.float32) * sc + sh
            if apply_input_relu:
                v = jnp.maximum(v, 0.0)
            rows = v.shape[0]
            m = jax.lax.broadcasted_iota(jnp.int32, (rows, 1), 0) + start
            return jnp.where((m >= 0) & (m < true_l), v, 0.0)

        # Assemble the haloed, transformed window: global rows [base-8, base+tl+8).
        win_ref[0:SUB, :] = xform(head_ref[0], base - SUB)
        win_ref[SUB:SUB + tl, :] = xform(body_ref[0], base)
        win_ref[SUB + tl:SUB + tl + SUB, :] = xform(tail_ref[0], base + tl)

        # Conv as 3 accumulated K=Cin_p matmuls on shifted window views
        # (no im2col scratch; operands cast to compute_dtype for the MXU).
        acc = jnp.dot(win_ref[SUB - 1:SUB - 1 + tl, :].astype(compute_dtype),
                      w_ref[0:cin_p, :], preferred_element_type=jnp.float32)
        acc += jnp.dot(win_ref[SUB:SUB + tl, :].astype(compute_dtype),
                       w_ref[cin_p:2 * cin_p, :], preferred_element_type=jnp.float32)
        acc += jnp.dot(win_ref[SUB + 1:SUB + 1 + tl, :].astype(compute_dtype),
                       w_ref[2 * cin_p:3 * cin_p, :], preferred_element_type=jnp.float32)
        acc = acc + b_ref[...]
        y_ref[...] = acc[None].astype(y_ref.dtype)

        # BatchNorm partial statistics over the valid rows of this tile,
        # accumulated (f32) across the sequential L-tile grid axis.
        rid = jax.lax.broadcasted_iota(jnp.int32, (tl, 1), 0) + base
        accv = jnp.where(rid < true_l, acc, 0.0)

        @pl.when(i == 0)
        def _init():
            ssum_ref[...] = jnp.zeros_like(ssum_ref)
            ssq_ref[...] = jnp.zeros_like(ssq_ref)

        ssum_ref[...] += jnp.sum(accv, axis=0, keepdims=True)[None]
        ssq_ref[...] += jnp.sum(accv * accv, axis=0, keepdims=True)[None]

    x_b = xin.dtype.itemsize
    y_b = jnp.dtype(y_dtype).itemsize
    cost = pl.CostEstimate(
        flops=2 * N * Lr * (3 * cin_p) * cout_p,
        transcendentals=0,
        bytes_accessed=(xin.size * x_b                           # body reads
                        + N * nt * 2 * SUB * cin_p * x_b         # head/tail halos
                        + w_mat.size * w_mat.dtype.itemsize
                        + (cout_p + 2 * cin_p) * 4               # bias/scale/shift
                        + N * Lr * cout_p * y_b                  # y writeback
                        + 2 * N * cout_p * 4))                   # stats

    return pl.pallas_call(
        kernel,
        out_shape=(jax.ShapeDtypeStruct((N, Lr, cout_p), y_dtype),
                   jax.ShapeDtypeStruct((N, 1, cout_p), jnp.float32),
                   jax.ShapeDtypeStruct((N, 1, cout_p), jnp.float32)),
        grid=(N, nt),
        in_specs=[
            pl.BlockSpec((1, tl, cin_p), lambda n, i: (n, i, 0)),       # body
            pl.BlockSpec((1, SUB, cin_p),                               # head
                         lambda n, i: (n, jnp.maximum(i * tl8 - 1, 0), 0)),
            pl.BlockSpec((1, SUB, cin_p),                               # tail
                         lambda n, i: (n, jnp.minimum((i + 1) * tl8, last_blk8), 0)),
            pl.BlockSpec((3 * cin_p, cout_p), lambda n, i: (0, 0)),     # weights
            pl.BlockSpec((1, cout_p), lambda n, i: (0, 0)),             # bias
            pl.BlockSpec((1, cin_p), lambda n, i: (0, 0)),              # in_scale
            pl.BlockSpec((1, cin_p), lambda n, i: (0, 0)),              # in_shift
        ],
        out_specs=(
            pl.BlockSpec((1, tl, cout_p), lambda n, i: (n, i, 0)),
            pl.BlockSpec((1, 1, cout_p), lambda n, i: (n, 0, 0)),
            pl.BlockSpec((1, 1, cout_p), lambda n, i: (n, 0, 0)),
        ),
        scratch_shapes=[
            pltpu.VMEM((tl + 2 * SUB, cin_p), jnp.float32),   # haloed window
        ],
        compiler_params=pltpu.CompilerParams(
            dimension_semantics=("parallel", "arbitrary")),
        cost_estimate=cost,
    )(xin, xin, xin, w_mat, bias, in_scale, in_shift)


def _affine_relu_ncl(y, scale, shift, *, block_l, out_dtype=jnp.float32):
    """out[n, c, l] = relu(y[n, l, c] * scale[c] + shift[c]); NCL written directly.

    The (tl, Cout_p) tile is transposed in-kernel (XLU) so the standalone XLA
    NLC->NCL transpose (an extra full HBM round trip of the output) is removed.
    """
    N, Lr, cp = y.shape
    tl = block_l
    nt = Lr // tl

    def kernel(y_ref, sc_ref, sh_ref, o_ref):
        v = jnp.maximum(y_ref[0].astype(jnp.float32) * sc_ref[...] + sh_ref[...], 0.0)
        o_ref[0] = v.T.astype(o_ref.dtype)

    return pl.pallas_call(
        kernel,
        out_shape=jax.ShapeDtypeStruct((N, cp, Lr), out_dtype),
        grid=(N, nt),
        in_specs=[pl.BlockSpec((1, tl, cp), lambda n, i: (n, i, 0)),
                  pl.BlockSpec((1, cp), lambda n, i: (0, 0)),
                  pl.BlockSpec((1, cp), lambda n, i: (0, 0))],
        out_specs=pl.BlockSpec((1, cp, tl), lambda n, i: (n, 0, i)),
        compiler_params=pltpu.CompilerParams(
            dimension_semantics=("parallel", "parallel")),
    )(y, scale, shift)


def _bn_scale_shift(ssum, ssq, gamma, beta, count, cout, cout_p):
    """Finalize training-mode (biased) batch stats into a per-channel affine."""
    s = jnp.sum(ssum[:, 0, :], axis=0)
    sq = jnp.sum(ssq[:, 0, :], axis=0)
    mean = s / count
    var = jnp.maximum(sq / count - mean * mean, 0.0)   # biased var, clamped
    g = jnp.pad(gamma, (0, cout_p - cout))
    b = jnp.pad(beta, (0, cout_p - cout))
    scale = g * jax.lax.rsqrt(var + EPS)
    shift = b - mean * scale
    return scale.reshape(1, cout_p), shift.reshape(1, cout_p)


def double_conv(x_ncl, params, *, block_l=1024, compute_dtype=jnp.bfloat16,
                store_dtype=None):
    """x_ncl: (N, Cin, L) f32, PyTorch layout. Returns (N, Cout, L) f32."""
    w1, b1, g1, be1, w2, b2, g2, be2 = params
    if store_dtype is None:
        store_dtype = compute_dtype
    N, cin, L = x_ncl.shape
    cout = w1.shape[0]

    cin_p = _round_up(cin, LANE)
    cout_p = _round_up(cout, LANE)
    # Tile size: single tile (8-aligned) for short sequences, else a lane-multiple
    # so the NCL output block (last dim = tl) stays legal and lane-dense.
    if L <= block_l:
        tl = _round_up(L, SUB)
    else:
        tl = _round_up(block_l, LANE)
    nt = pl.cdiv(L, tl)
    lr = nt * tl

    # NCL -> NLC once; pad channels to lane width and length to the tile grid.
    # Cast to the storage dtype so conv1's HBM reads are already narrow.
    x = jnp.transpose(x_ncl, (0, 2, 1))
    x = jnp.pad(x, ((0, 0), (0, lr - L), (0, cin_p - cin))).astype(store_dtype)

    def prep_w(w, c_in, c_in_p):
        wt = jnp.transpose(w, (2, 1, 0))                              # (3, Cin, Cout)
        wt = jnp.pad(wt, ((0, 0), (0, c_in_p - c_in), (0, cout_p - cout)))
        return wt.reshape(3 * c_in_p, cout_p).astype(compute_dtype)   # per-tap stacked

    w1m = prep_w(w1, cin, cin_p)
    w2m = prep_w(w2, cout, cout_p)
    b1p = jnp.pad(b1, (0, cout_p - cout)).reshape(1, cout_p).astype(jnp.float32)
    b2p = jnp.pad(b2, (0, cout_p - cout)).reshape(1, cout_p).astype(jnp.float32)
    one_in = jnp.ones((1, cin_p), jnp.float32)
    zero_in = jnp.zeros((1, cin_p), jnp.float32)

    # conv1 (+ BN1 partial stats)
    y1, s1, q1 = _conv_bn_stats(x, w1m, b1p, one_in, zero_in,
                                apply_input_relu=False, true_l=L, block_l=tl,
                                compute_dtype=compute_dtype, y_dtype=store_dtype)
    scale1, shift1 = _bn_scale_shift(s1, q1, g1, be1, N * L, cout, cout_p)

    # bn1+relu1 fused into conv2's input transform (+ BN2 partial stats)
    y2, s2, q2 = _conv_bn_stats(y1, w2m, b2p, scale1, shift1,
                                apply_input_relu=True, true_l=L, block_l=tl,
                                compute_dtype=compute_dtype, y_dtype=store_dtype)
    scale2, shift2 = _bn_scale_shift(s2, q2, g2, be2, N * L, cout, cout_p)

    # bn2 + relu2, emitting NCL directly (in-kernel transpose).
    out_ncl = _affine_relu_ncl(y2, scale2, shift2, block_l=tl,
                               out_dtype=jnp.float32)
    return out_ncl[:, :cout, :L]


def ref_forward(x_ncl, params):
    """Pure-JAX reference with the same semantics (NCL throughout, f32)."""
    w1, b1, g1, be1, w2, b2, g2, be2 = params

    def conv(x, w, b):
        y = jax.lax.conv_general_dilated(
            x, w, window_strides=(1,), padding=((1, 1),),
            dimension_numbers=('NCH', 'OIH', 'NCH'))
        return y + b[None, :, None]

    def bn_relu(x, g, be):
        mean = x.mean(axis=(0, 2), keepdims=True)
        var = ((x - mean) ** 2).mean(axis=(0, 2), keepdims=True)
        y = (x - mean) * jax.lax.rsqrt(var + EPS) * g[None, :, None] + be[None, :, None]
        return jnp.maximum(y, 0.0)

    y = bn_relu(conv(x_ncl, w1, b1), g1, be1)
    y = bn_relu(conv(y, w2, b2), g2, be2)
    return y


if __name__ == "__main__":
    N, Cin, Cout, L = 2, 4, 8, 16

    key = jax.random.PRNGKey(0)
    kx, kw1, kb1, kw2, kb2 = jax.random.split(key, 5)

    x = jax.random.normal(kx, (N, Cin, L), dtype=jnp.float32)

    # Deterministic parameter init (shapes from nn.Conv1d / nn.BatchNorm1d).
    w1 = jax.random.normal(kw1, (Cout, Cin, 3), dtype=jnp.float32) * 0.2
    b1 = jax.random.normal(kb1, (Cout,), dtype=jnp.float32) * 0.1
    w2 = jax.random.normal(kw2, (Cout, Cout, 3), dtype=jnp.float32) * 0.2
    b2 = jax.random.normal(kb2, (Cout,), dtype=jnp.float32) * 0.1
    g1 = jnp.ones((Cout,), jnp.float32)    # BatchNorm default weight
    be1 = jnp.zeros((Cout,), jnp.float32)  # BatchNorm default bias
    g2 = jnp.ones((Cout,), jnp.float32)
    be2 = jnp.zeros((Cout,), jnp.float32)

    params = (w1, b1, g1, be1, w2, b2, g2, be2)

    ref = jax.block_until_ready(ref_forward(x, params))

    # Exact-math path (f32 operands & intermediates): tight check of kernel logic.
    dc_f32 = jax.jit(lambda xx, pp: double_conv(
        xx, pp, compute_dtype=jnp.float32, store_dtype=jnp.float32))
    out_f32 = jax.block_until_ready(dc_f32(x, params))
    assert out_f32.shape == (N, Cout, L), out_f32.shape
    np.testing.assert_allclose(np.asarray(out_f32), np.asarray(ref),
                               atol=2e-4, rtol=2e-4)

    # Default fast path: bf16 MXU operands + bf16 intermediates, f32 accumulation.
    dc = jax.jit(double_conv)
    out = jax.block_until_ready(dc(x, params))
    assert out.shape == (N, Cout, L), out.shape
    np.testing.assert_allclose(np.asarray(out), np.asarray(ref),
                               atol=6e-2, rtol=6e-2)
    print("KERNEL_OK")
</pallas_src>

<mosaic_0001>
module attributes {stable_mosaic.version = 11 : i64} {
  func.func @kernel(%arg0: i32, %arg1: i32, %arg2: memref<1x16x128xf32, #tpu.memory_space<vmem>>, %arg3: memref<1x8x128xf32, #tpu.memory_space<vmem>>, %arg4: memref<1x8x128xf32, #tpu.memory_space<vmem>>, %arg5: memref<384x128xf32, #tpu.memory_space<vmem>>, %arg6: memref<1x128xf32, #tpu.memory_space<vmem>>, %arg7: memref<1x128xf32, #tpu.memory_space<vmem>>, %arg8: memref<1x128xf32, #tpu.memory_space<vmem>>, %arg9: memref<1x16x128xf32, #tpu.memory_space<vmem>>, %arg10: memref<1x1x128xf32, #tpu.memory_space<vmem>>, %arg11: memref<1x1x128xf32, #tpu.memory_space<vmem>>, %arg12: memref<32x128xf32, #tpu.memory_space<vmem>>) attributes {dimension_semantics = [#tpu.dimension_semantics<parallel>, #tpu.dimension_semantics<arbitrary>], iteration_bounds = array<i64: 2, 1>, scalar_prefetch = 0 : i64, scratch_operands = 1 : i64, tpu.core_type = #tpu.core_type<tc>, window_params = [{transform_indices = @transform_0, window_bounds = array<i64: 1, 16, 128>}, {transform_indices = @transform_1, window_bounds = array<i64: 1, 8, 128>}, {transform_indices = @transform_2, window_bounds = array<i64: 1, 8, 128>}, {pipeline_mode = #tpu.pipeline_mode<synchronous>, transform_indices = @transform_3, window_bounds = array<i64: 384, 128>}, {pipeline_mode = #tpu.pipeline_mode<synchronous>, transform_indices = @transform_4, window_bounds = array<i64: 1, 128>}, {pipeline_mode = #tpu.pipeline_mode<synchronous>, transform_indices = @transform_5, window_bounds = array<i64: 1, 128>}, {pipeline_mode = #tpu.pipeline_mode<synchronous>, transform_indices = @transform_6, window_bounds = array<i64: 1, 128>}, {transform_indices = @transform_7, window_bounds = array<i64: 1, 16, 128>}, {transform_indices = @transform_8, window_bounds = array<i64: 1, 1, 128>}, {transform_indices = @transform_9, window_bounds = array<i64: 1, 1, 128>}]} {
    %c16_i32 = arith.constant 16 : i32
    %0 = arith.muli %arg1, %c16_i32 : i32
    %c0 = arith.constant 0 : index
    %c0_0 = arith.constant 0 : index
    %1 = vector.load %arg7[%c0, %c0_0] : memref<1x128xf32, #tpu.memory_space<vmem>>, vector<1x128xf32>
    %c0_1 = arith.constant 0 : index
    %c0_2 = arith.constant 0 : index
    %2 = vector.load %arg8[%c0_1, %c0_2] : memref<1x128xf32, #tpu.memory_space<vmem>>, vector<1x128xf32>
    %c0_3 = arith.constant 0 : index
    %c0_4 = arith.constant 0 : index
    %c0_5 = arith.constant 0 : index
    %3 = vector.load %arg3[%c0_3, %c0_4, %c0_5] : memref<1x8x128xf32, #tpu.memory_space<vmem>>, vector<1x8x128xf32>
    %4 = vector.shape_cast %3 : vector<1x8x128xf32> to vector<8x128xf32>
    %c8_i32 = arith.constant 8 : i32
    %5 = arith.subi %0, %c8_i32 : i32
    %6 = vector.broadcast %1 : vector<1x128xf32> to vector<8x128xf32>
    %7 = arith.mulf %4, %6 : vector<8x128xf32>
    %8 = vector.broadcast %2 : vector<1x128xf32> to vector<8x128xf32>
    %9 = arith.addf %7, %8 : vector<8x128xf32>
    %10 = tpu.iota {dimensions = array<i32: 0>} : vector<8x1xi32>
    %11 = vector.broadcast %5 : i32 to vector<8x1xi32>
    %12 = arith.addi %10, %11 : vector<8x1xi32>
    %c0_i32 = arith.constant 0 : i32
    %13 = vector.broadcast %c0_i32 : i32 to vector<8x1xi32>
    %14 = arith.cmpi sge, %12, %13 : vector<8x1xi32>
    %c16_i32_6 = arith.constant 16 : i32
    %15 = vector.broadcast %c16_i32_6 : i32 to vector<8x1xi32>
    %16 = arith.cmpi slt, %12, %15 : vector<8x1xi32>
    %17 = arith.andi %14, %16 : vector<8x1xi1>
    %cst = arith.constant 0.000000e+00 : f32
    %18 = vector.shape_cast %17 : vector<8x1xi1> to vector<8x1xi1>
    %19 = vector.broadcast %18 : vector<8x1xi1> to vector<8x128xi1>
    %20 = vector.broadcast %cst : f32 to vector<8x128xf32>
    %21 = arith.select %19, %9, %20 : vector<8x128xi1>, vector<8x128xf32>
    %c0_7 = arith.constant 0 : index
    %c0_8 = arith.constant 0 : index
    %22 = vector.load %arg12[%c0_7, %c0_8] : memref<32x128xf32, #tpu.memory_space<vmem>>, vector<8x128xf32>
    tpu.vector_store %arg12[%c0_7, %c0_8], %21 {strides = array<i32>} : memref<32x128xf32, #tpu.memory_space<vmem>>, vector<8x128xf32>,
    %c0_9 = arith.constant 0 : index
    %c0_10 = arith.constant 0 : index
    %c0_11 = arith.constant 0 : index
    %23 = vector.load %arg2[%c0_9, %c0_10, %c0_11] : memref<1x16x128xf32, #tpu.memory_space<vmem>>, vector<1x16x128xf32>
    %24 = vector.shape_cast %23 : vector<1x16x128xf32> to vector<16x128xf32>
    %25 = vector.broadcast %1 : vector<1x128xf32> to vector<16x128xf32>
    %26 = arith.mulf %24, %25 : vector<16x128xf32>
    %27 = vector.broadcast %2 : vector<1x128xf32> to vector<16x128xf32>
    %28 = arith.addf %26, %27 : vector<16x128xf32>
    %29 = tpu.iota {dimensions = array<i32: 0>} : vector<16x1xi32>
    %30 = vector.broadcast %0 : i32 to vector<16x1xi32>
    %31 = arith.addi %29, %30 : vector<16x1xi32>
    %c0_i32_12 = arith.constant 0 : i32
    %32 = vector.broadcast %c0_i32_12 : i32 to vector<16x1xi32>
    %33 = arith.cmpi sge, %31, %32 : vector<16x1xi32>
    %c16_i32_13 = arith.constant 16 : i32
    %34 = vector.broadcast %c16_i32_13 : i32 to vector<16x1xi32>
    %35 = arith.cmpi slt, %31, %34 : vector<16x1xi32>
    %36 = arith.andi %33, %35 : vector<16x1xi1>
    %cst_14 = arith.constant 0.000000e+00 : f32
    %37 = vector.shape_cast %36 : vector<16x1xi1> to vector<16x1xi1>
    %38 = vector.broadcast %37 : vector<16x1xi1> to vector<16x128xi1>
    %39 = vector.broadcast %cst_14 : f32 to vector<16x128xf32>
    %40 = arith.select %38, %28, %39 : vector<16x128xi1>, vector<16x128xf32>
    %c8 = arith.constant 8 : index
    %c0_15 = arith.constant 0 : index
    %41 = vector.load %arg12[%c8, %c0_15] : memref<32x128xf32, #tpu.memory_space<vmem>>, vector<16x128xf32>
    tpu.vector_store %arg12[%c8, %c0_15], %40 {strides = array<i32>} : memref<32x128xf32, #tpu.memory_space<vmem>>, vector<16x128xf32>,
    %c0_16 = arith.constant 0 : index
    %c0_17 = arith.constant 0 : index
    %c0_18 = arith.constant 0 : index
    %42 = vector.load %arg4[%c0_16, %c0_17, %c0_18] : memref<1x8x128xf32, #tpu.memory_space<vmem>>, vector<1x8x128xf32>
    %43 = vector.shape_cast %42 : vector<1x8x128xf32> to vector<8x128xf32>
    %c16_i32_19 = arith.constant 16 : i32
    %44 = arith.addi %0, %c16_i32_19 : i32
    %45 = vector.broadcast %1 : vector<1x128xf32> to vector<8x128xf32>
    %46 = arith.mulf %43, %45 : vector<8x128xf32>
    %47 = vector.broadcast %2 : vector<1x128xf32> to vector<8x128xf32>
    %48 = arith.addf %46, %47 : vector<8x128xf32>
    %49 = tpu.iota {dimensions = array<i32: 0>} : vector<8x1xi32>
    %50 = vector.broadcast %44 : i32 to vector<8x1xi32>
    %51 = arith.addi %49, %50 : vector<8x1xi32>
    %c0_i32_20 = arith.constant 0 : i32
    %52 = vector.broadcast %c0_i32_20 : i32 to vector<8x1xi32>
    %53 = arith.cmpi sge, %51, %52 : vector<8x1xi32>
    %c16_i32_21 = arith.constant 16 : i32
    %54 = vector.broadcast %c16_i32_21 : i32 to vector<8x1xi32>
    %55 = arith.cmpi slt, %51, %54 : vector<8x1xi32>
    %56 = arith.andi %53, %55 : vector<8x1xi1>
    %cst_22 = arith.constant 0.000000e+00 : f32
    %57 = vector.shape_cast %56 : vector<8x1xi1> to vector<8x1xi1>
    %58 = vector.broadcast %57 : vector<8x1xi1> to vector<8x128xi1>
    %59 = vector.broadcast %cst_22 : f32 to vector<8x128xf32>
    %60 = arith.select %58, %48, %59 : vector<8x128xi1>, vector<8x128xf32>
    %c24 = arith.constant 24 : index
    %c0_23 = arith.constant 0 : index
    %61 = vector.load %arg12[%c24, %c0_23] : memref<32x128xf32, #tpu.memory_space<vmem>>, vector<8x128xf32>
    tpu.vector_store %arg12[%c24, %c0_23], %60 {strides = array<i32>} : memref<32x128xf32, #tpu.memory_space<vmem>>, vector<8x128xf32>,
    %c7 = arith.constant 7 : index
    %c0_24 = arith.constant 0 : index
    %62 = vector.load %arg12[%c7, %c0_24] : memref<32x128xf32, #tpu.memory_space<vmem>>, vector<16x128xf32>
    %c0_25 = arith.constant 0 : index
    %c0_26 = arith.constant 0 : index
    %63 = vector.load %arg5[%c0_25, %c0_26] : memref<384x128xf32, #tpu.memory_space<vmem>>, vector<128x128xf32>
    %cst_27 = arith.constant dense<0.000000e+00> : vector<16x128xf32>
    %64 = tpu.matmul %62, %63, %cst_27 {dimension_numbers = #tpu.dot_dimension_numbers<[1], [0], [0], [1], [0, 0, 1, 1], [], []>} : vector<16x128xf32>, vector<128x128xf32>, vector<16x128xf32> -> vector<16x128xf32>
    %c8_28 = arith.constant 8 : index
    %c0_29 = arith.constant 0 : index
    %65 = vector.load %arg12[%c8_28, %c0_29] : memref<32x128xf32, #tpu.memory_space<vmem>>, vector<16x128xf32>
    %c128 = arith.constant 128 : index
    %c0_30 = arith.constant 0 : index
    %66 = vector.load %arg5[%c128, %c0_30] : memref<384x128xf32, #tpu.memory_space<vmem>>, vector<128x128xf32>
    %cst_31 = arith.constant dense<0.000000e+00> : vector<16x128xf32>
    %67 = tpu.matmul %65, %66, %cst_31 {dimension_numbers = #tpu.dot_dimension_numbers<[1], [0], [0], [1], [0, 0, 1, 1], [], []>} : vector<16x128xf32>, vector<128x128xf32>, vector<16x128xf32> -> vector<16x128xf32>
    %68 = arith.addf %64, %67 : vector<16x128xf32>
    %c9 = arith.constant 9 : index
    %c0_32 = arith.constant 0 : index
    %69 = vector.load %arg12[%c9, %c0_32] : memref<32x128xf32, #tpu.memory_space<vmem>>, vector<16x128xf32>
    %c256 = arith.constant 256 : index
    %c0_33 = arith.constant 0 : index
    %70 = vector.load %arg5[%c256, %c0_33] : memref<384x128xf32, #tpu.memory_space<vmem>>, vector<128x128xf32>
    %cst_34 = arith.constant dense<0.000000e+00> : vector<16x128xf32>
    %71 = tpu.matmul %69, %70, %cst_34 {dimension_numbers = #tpu.dot_dimension_numbers<[1], [0], [0], [1], [0, 0, 1, 1], [], []>} : vector<16x128xf32>, vector<128x128xf32>, vector<16x128xf32> -> vector<16x128xf32>
    %72 = arith.addf %68, %71 : vector<16x128xf32>
    %c0_35 = arith.constant 0 : index
    %c0_36 = arith.constant 0 : index
    %73 = vector.load %arg6[%c0_35, %c0_36] : memref<1x128xf32, #tpu.memory_space<vmem>>, vector<1x128xf32>
    %74 = vector.broadcast %73 : vector<1x128xf32> to vector<16x128xf32>
    %75 = arith.addf %72, %74 : vector<16x128xf32>
    %76 = vector.shape_cast %75 : vector<16x128xf32> to vector<1x16x128xf32>
    %c0_37 = arith.constant 0 : index
    %c0_38 = arith.constant 0 : index
    %c0_39 = arith.constant 0 : index
    %77 = vector.load %arg9[%c0_37, %c0_38, %c0_39] : memref<1x16x128xf32, #tpu.memory_space<vmem>>, vector<1x16x128xf32>
    tpu.vector_store %arg9[%c0_37, %c0_38, %c0_39], %76 {strides = array<i32>} : memref<1x16x128xf32, #tpu.memory_space<vmem>>, vector<1x16x128xf32>,
    %78 = tpu.iota {dimensions = array<i32: 0>} : vector<16x1xi32>
    %79 = vector.broadcast %0 : i32 to vector<16x1xi32>
    %80 = arith.addi %78, %79 : vector<16x1xi32>
    %c16_i32_40 = arith.constant 16 : i32
    %81 = vector.broadcast %c16_i32_40 : i32 to vector<16x1xi32>
    %82 = arith.cmpi slt, %80, %81 : vector<16x1xi32>
    %cst_41 = arith.constant 0.000000e+00 : f32
    %83 = vector.shape_cast %82 : vector<16x1xi1> to vector<16x1xi1>
    %84 = vector.broadcast %83 : vector<16x1xi1> to vector<16x128xi1>
    %85 = vector.broadcast %cst_41 : f32 to vector<16x128xf32>
    %86 = arith.select %84, %75, %85 : vector<16x128xi1>, vector<16x128xf32>
    %c0_i32_42 = arith.constant 0 : i32
    %87 = arith.cmpi eq, %arg1, %c0_i32_42 : i32
    %88 = arith.extui %87 : i1 to i32
    %c0_i32_43 = arith.constant 0 : i32
    %89 = arith.cmpi ne, %88, %c0_i32_43 : i32
    scf.if %89 {
      %cst_58 = arith.constant 0.000000e+00 : f32
      %103 = vector.broadcast %cst_58 : f32 to vector<1x1x128xf32>
      %c0_59 = arith.constant 0 : index
      %c0_60 = arith.constant 0 : index
      %c0_61 = arith.constant 0 : index
      %104 = vector.load %arg10[%c0_59, %c0_60, %c0_61] : memref<1x1x128xf32, #tpu.memory_space<vmem>>, vector<1x1x128xf32>
      tpu.vector_store %arg10[%c0_59, %c0_60, %c0_61], %103 {strides = array<i32>} : memref<1x1x128xf32, #tpu.memory_space<vmem>>, vector<1x1x128xf32>,
      %cst_62 = arith.constant 0.000000e+00 : f32
      %105 = vector.broadcast %cst_62 : f32 to vector<1x1x128xf32>
      %c0_63 = arith.constant 0 : index
      %c0_64 = arith.constant 0 : index
      %c0_65 = arith.constant 0 : index
      %106 = vector.load %arg11[%c0_63, %c0_64, %c0_65] : memref<1x1x128xf32, #tpu.memory_space<vmem>>, vector<1x1x128xf32>
      tpu.vector_store %arg11[%c0_63, %c0_64, %c0_65], %105 {strides = array<i32>} : memref<1x1x128xf32, #tpu.memory_space<vmem>>, vector<1x1x128xf32>,
    } else {
    }
    %c0_44 = arith.constant 0 : index
    %c0_45 = arith.constant 0 : index
    %c0_46 = arith.constant 0 : index
    %90 = vector.load %arg10[%c0_44, %c0_45, %c0_46] : memref<1x1x128xf32, #tpu.memory_space<vmem>>, vector<1x1x128xf32>
    %cst_47 = arith.constant dense<0.000000e+00> : vector<128xf32>
    %91 = vector.multi_reduction <add>, %86, %cst_47 [0] : vector<16x128xf32> to vector<128xf32>
    %92 = vector.shape_cast %91 : vector<128xf32> to vector<1x128xf32>
    %93 = vector.shape_cast %92 : vector<1x128xf32> to vector<1x1x128xf32>
    %94 = arith.addf %90, %93 : vector<1x1x128xf32>
    %c0_48 = arith.constant 0 : index
    %c0_49 = arith.constant 0 : index
    %c0_50 = arith.constant 0 : index
    %95 = vector.load %arg10[%c0_48, %c0_49, %c0_50] : memref<1x1x128xf32, #tpu.memory_space<vmem>>, vector<1x1x128xf32>
    tpu.vector_store %arg10[%c0_48, %c0_49, %c0_50], %94 {strides = array<i32>} : memref<1x1x128xf32, #tpu.memory_space<vmem>>, vector<1x1x128xf32>,
    %c0_51 = arith.constant 0 : index
    %c0_52 = arith.constant 0 : index
    %c0_53 = arith.constant 0 : index
    %96 = vector.load %arg11[%c0_51, %c0_52, %c0_53] : memref<1x1x128xf32, #tpu.memory_space<vmem>>, vector<1x1x128xf32>
    %97 = arith.mulf %86, %86 : vector<16x128xf32>
    %cst_54 = arith.constant dense<0.000000e+00> : vector<128xf32>
    %98 = vector.multi_reduction <add>, %97, %cst_54 [0] : vector<16x128xf32> to vector<128xf32>
    %99 = vector.shape_cast %98 : vector<128xf32> to vector<1x128xf32>
    %100 = vector.shape_cast %99 : vector<1x128xf32> to vector<1x1x128xf32>
    %101 = arith.addf %96, %100 : vector<1x1x128xf32>
    %c0_55 = arith.constant 0 : index
    %c0_56 = arith.constant 0 : index
    %c0_57 = arith.constant 0 : index
    %102 = vector.load %arg11[%c0_55, %c0_56, %c0_57] : memref<1x1x128xf32, #tpu.memory_space<vmem>>, vector<1x1x128xf32>
    tpu.vector_store %arg11[%c0_55, %c0_56, %c0_57], %101 {strides = array<i32>} : memref<1x1x128xf32, #tpu.memory_space<vmem>>, vector<1x1x128xf32>,
    return
  }
  func.func @transform_0(%arg0: i32, %arg1: i32) -> (i32, i32, i32) {
    %c0_i32 = arith.constant 0 : i32
    %c0_i32_0 = arith.constant 0 : i32
    return %arg0, %arg1, %c0_i32 : i32, i32, i32
  }
  func.func @transform_1(%arg0: i32, %arg1: i32) -> (i32, i32, i32) {
    %c2_i32 = arith.constant 2 : i32
    %0 = arith.muli %arg1, %c2_i32 : i32
    %c1_i32 = arith.constant 1 : i32
    %1 = arith.subi %0, %c1_i32 : i32
    %c0_i32 = arith.constant 0 : i32
    %2 = arith.maxsi %1, %c0_i32 : i32
    %c0_i32_0 = arith.constant 0 : i32
    %c0_i32_1 = arith.constant 0 : i32
    return %arg0, %2, %c0_i32_0 : i32, i32, i32
  }
  func.func @transform_2(%arg0: i32, %arg1: i32) -> (i32, i32, i32) {
    %c1_i32 = arith.constant 1 : i32
    %0 = arith.addi %arg1, %c1_i32 : i32
    %c2_i32 = arith.constant 2 : i32
    %1 = arith.muli %0, %c2_i32 : i32
    %c1_i32_0 = arith.constant 1 : i32
    %2 = arith.minsi %1, %c1_i32_0 : i32
    %c0_i32 = arith.constant 0 : i32
    %c0_i32_1 = arith.constant 0 : i32
    return %arg0, %2, %c0_i32 : i32, i32, i32
  }
  func.func @transform_3(%arg0: i32, %arg1: i32) -> (i32, i32) {
    %c0_i32 = arith.constant 0 : i32
    %c0_i32_0 = arith.constant 0 : i32
    %c0_i32_1 = arith.constant 0 : i32
    return %c0_i32, %c0_i32_0 : i32, i32
  }
  func.func @transform_4(%arg0: i32, %arg1: i32) -> (i32, i32) {
    %c0_i32 = arith.constant 0 : i32
    %c0_i32_0 = arith.constant 0 : i32
    %c0_i32_1 = arith.constant 0 : i32
    return %c0_i32, %c0_i32_0 : i32, i32
  }
  func.func @transform_5(%arg0: i32, %arg1: i32) -> (i32, i32) {
    %c0_i32 = arith.constant 0 : i32
    %c0_i32_0 = arith.constant 0 : i32
    %c0_i32_1 = arith.constant 0 : i32
    return %c0_i32, %c0_i32_0 : i32, i32
  }
  func.func @transform_6(%arg0: i32, %arg1: i32) -> (i32, i32) {
    %c0_i32 = arith.constant 0 : i32
    %c0_i32_0 = arith.constant 0 : i32
    %c0_i32_1 = arith.constant 0 : i32
    return %c0_i32, %c0_i32_0 : i32, i32
  }
  func.func @transform_7(%arg0: i32, %arg1: i32) -> (i32, i32, i32) {
    %c0_i32 = arith.constant 0 : i32
    %c0_i32_0 = arith.constant 0 : i32
    return %arg0, %arg1, %c0_i32 : i32, i32, i32
  }
  func.func @transform_8(%arg0: i32, %arg1: i32) -> (i32, i32, i32) {
    %c0_i32 = arith.constant 0 : i32
    %c0_i32_0 = arith.constant 0 : i32
    %c0_i32_1 = arith.constant 0 : i32
    return %arg0, %c0_i32, %c0_i32_0 : i32, i32, i32
  }
  func.func @transform_9(%arg0: i32, %arg1: i32) -> (i32, i32, i32) {
    %c0_i32 = arith.constant 0 : i32
    %c0_i32_0 = arith.constant 0 : i32
    %c0_i32_1 = arith.constant 0 : i32
    return %arg0, %c0_i32, %c0_i32_0 : i32, i32, i32
  }
}

module attributes {stable_mosaic.version = 11 : i64} {
  func.func @kernel(%arg0: i32, %arg1: i32, %arg2: memref<1x16x128xf32, #tpu.memory_space<vmem>>, %arg3: memref<1x128xf32, #tpu.memory_space<vmem>>, %arg4: memref<1x128xf32, #tpu.memory_space<vmem>>, %arg5: memref<1x128x16xf32, #tpu.memory_space<vmem>>) attributes {dimension_semantics = [#tpu.dimension_semantics<parallel>, #tpu.dimension_semantics<parallel>], iteration_bounds = array<i64: 2, 1>, scalar_prefetch = 0 : i64, scratch_operands = 0 : i64, tpu.core_type = #tpu.core_type<tc>, window_params = [{transform_indices = @transform_0, window_bounds = array<i64: 1, 16, 128>}, {pipeline_mode = #tpu.pipeline_mode<synchronous>, transform_indices = @transform_1, window_bounds = array<i64: 1, 128>}, {pipeline_mode = #tpu.pipeline_mode<synchronous>, transform_indices = @transform_2, window_bounds = array<i64: 1, 128>}, {transform_indices = @transform_3, window_bounds = array<i64: 1, 128, 16>}]} {
    %c0 = arith.constant 0 : index
    %c0_0 = arith.constant 0 : index
    %c0_1 = arith.constant 0 : index
    %0 = vector.load %arg2[%c0, %c0_0, %c0_1] : memref<1x16x128xf32, #tpu.memory_space<vmem>>, vector<1x16x128xf32>
    %1 = vector.shape_cast %0 : vector<1x16x128xf32> to vector<16x128xf32>
    %c0_2 = arith.constant 0 : index
    %c0_3 = arith.constant 0 : index
    %2 = vector.load %arg3[%c0_2, %c0_3] : memref<1x128xf32, #tpu.memory_space<vmem>>, vector<1x128xf32>
    %3 = vector.broadcast %2 : vector<1x128xf32> to vector<16x128xf32>
    %4 = arith.mulf %1, %3 : vector<16x128xf32>
    %c0_4 = arith.constant 0 : index
    %c0_5 = arith.constant 0 : index
    %5 = vector.load %arg4[%c0_4, %c0_5] : memref<1x128xf32, #tpu.memory_space<vmem>>, vector<1x128xf32>
    %6 = vector.broadcast %5 : vector<1x128xf32> to vector<16x128xf32>
    %7 = arith.addf %4, %6 : vector<16x128xf32>
    %cst = arith.constant 0.000000e+00 : f32
    %8 = vector.broadcast %cst : f32 to vector<16x128xf32>
    %9 = arith.maximumf %7, %8 : vector<16x128xf32>
    %10 = tpu.transpose %9, [1, 0] : vector<16x128xf32> -> vector<128x16xf32>
    %c0_6 = arith.constant 0 : index
    %c0_7 = arith.constant 0 : index
    %c0_8 = arith.constant 0 : index
    %11 = vector.load %arg5[%c0_6, %c0_7, %c0_8] : memref<1x128x16xf32, #tpu.memory_space<vmem>>, vector<1x128x16xf32>
    %12 = vector.shape_cast %11 : vector<1x128x16xf32> to vector<128x16xf32>
    %13 = vector.shape_cast %10 : vector<128x16xf32> to vector<1x128x16xf32>
    tpu.vector_store %arg5[%c0_6, %c0_7, %c0_8], %13 {strides = array<i32>} : memref<1x128x16xf32, #tpu.memory_space<vmem>>, vector<1x128x16xf32>,
    return
  }
  func.func @transform_0(%arg0: i32, %arg1: i32) -> (i32, i32, i32) {
    %c0_i32 = arith.constant 0 : i32
    %c0_i32_0 = arith.constant 0 : i32
    return %arg0, %arg1, %c0_i32 : i32, i32, i32
  }
  func.func @transform_1(%arg0: i32, %arg1: i32) -> (i32, i32) {
    %c0_i32 = arith.constant 0 : i32
    %c0_i32_0 = arith.constant 0 : i32
    %c0_i32_1 = arith.constant 0 : i32
    return %c0_i32, %c0_i32_0 : i32, i32
  }
  func.func @transform_2(%arg0: i32, %arg1: i32) -> (i32, i32) {
    %c0_i32 = arith.constant 0 : i32
    %c0_i32_0 = arith.constant 0 : i32
    %c0_i32_1 = arith.constant 0 : i32
    return %c0_i32, %c0_i32_0 : i32, i32
  }
  func.func @transform_3(%arg0: i32, %arg1: i32) -> (i32, i32, i32) {
    %c0_i32 = arith.constant 0 : i32
    %c0_i32_0 = arith.constant 0 : i32
    return %arg0, %c0_i32, %arg1 : i32, i32, i32
  }
}

module attributes {stable_mosaic.version = 11 : i64} {
  func.func @kernel(%arg0: i32, %arg1: i32, %arg2: memref<1x16x128xf32, #tpu.memory_space<vmem>>, %arg3: memref<1x8x128xf32, #tpu.memory_space<vmem>>, %arg4: memref<1x8x128xf32, #tpu.memory_space<vmem>>, %arg5: memref<384x128xf32, #tpu.memory_space<vmem>>, %arg6: memref<1x128xf32, #tpu.memory_space<vmem>>, %arg7: memref<1x128xf32, #tpu.memory_space<vmem>>, %arg8: memref<1x128xf32, #tpu.memory_space<vmem>>, %arg9: memref<1x16x128xf32, #tpu.memory_space<vmem>>, %arg10: memref<1x1x128xf32, #tpu.memory_space<vmem>>, %arg11: memref<1x1x128xf32, #tpu.memory_space<vmem>>, %arg12: memref<32x128xf32, #tpu.memory_space<vmem>>) attributes {dimension_semantics = [#tpu.dimension_semantics<parallel>, #tpu.dimension_semantics<arbitrary>], iteration_bounds = array<i64: 2, 1>, scalar_prefetch = 0 : i64, scratch_operands = 1 : i64, tpu.core_type = #tpu.core_type<tc>, window_params = [{transform_indices = @transform_0, window_bounds = array<i64: 1, 16, 128>}, {transform_indices = @transform_1, window_bounds = array<i64: 1, 8, 128>}, {transform_indices = @transform_2, window_bounds = array<i64: 1, 8, 128>}, {pipeline_mode = #tpu.pipeline_mode<synchronous>, transform_indices = @transform_3, window_bounds = array<i64: 384, 128>}, {pipeline_mode = #tpu.pipeline_mode<synchronous>, transform_indices = @transform_4, window_bounds = array<i64: 1, 128>}, {pipeline_mode = #tpu.pipeline_mode<synchronous>, transform_indices = @transform_5, window_bounds = array<i64: 1, 128>}, {pipeline_mode = #tpu.pipeline_mode<synchronous>, transform_indices = @transform_6, window_bounds = array<i64: 1, 128>}, {transform_indices = @transform_7, window_bounds = array<i64: 1, 16, 128>}, {transform_indices = @transform_8, window_bounds = array<i64: 1, 1, 128>}, {transform_indices = @transform_9, window_bounds = array<i64: 1, 1, 128>}]} {
    %c16_i32 = arith.constant 16 : i32
    %0 = arith.muli %arg1, %c16_i32 : i32
    %c0 = arith.constant 0 : index
    %c0_0 = arith.constant 0 : index
    %1 = vector.load %arg7[%c0, %c0_0] : memref<1x128xf32, #tpu.memory_space<vmem>>, vector<1x128xf32>
    %c0_1 = arith.constant 0 : index
    %c0_2 = arith.constant 0 : index
    %2 = vector.load %arg8[%c0_1, %c0_2] : memref<1x128xf32, #tpu.memory_space<vmem>>, vector<1x128xf32>
    %c0_3 = arith.constant 0 : index
    %c0_4 = arith.constant 0 : index
    %c0_5 = arith.constant 0 : index
    %3 = vector.load %arg3[%c0_3, %c0_4, %c0_5] : memref<1x8x128xf32, #tpu.memory_space<vmem>>, vector<1x8x128xf32>
    %4 = vector.shape_cast %3 : vector<1x8x128xf32> to vector<8x128xf32>
    %c8_i32 = arith.constant 8 : i32
    %5 = arith.subi %0, %c8_i32 : i32
    %6 = vector.broadcast %1 : vector<1x128xf32> to vector<8x128xf32>
    %7 = arith.mulf %4, %6 : vector<8x128xf32>
    %8 = vector.broadcast %2 : vector<1x128xf32> to vector<8x128xf32>
    %9 = arith.addf %7, %8 : vector<8x128xf32>
    %cst = arith.constant 0.000000e+00 : f32
    %10 = vector.broadcast %cst : f32 to vector<8x128xf32>
    %11 = arith.maximumf %9, %10 : vector<8x128xf32>
    %12 = tpu.iota {dimensions = array<i32: 0>} : vector<8x1xi32>
    %13 = vector.broadcast %5 : i32 to vector<8x1xi32>
    %14 = arith.addi %12, %13 : vector<8x1xi32>
    %c0_i32 = arith.constant 0 : i32
    %15 = vector.broadcast %c0_i32 : i32 to vector<8x1xi32>
    %16 = arith.cmpi sge, %14, %15 : vector<8x1xi32>
    %c16_i32_6 = arith.constant 16 : i32
    %17 = vector.broadcast %c16_i32_6 : i32 to vector<8x1xi32>
    %18 = arith.cmpi slt, %14, %17 : vector<8x1xi32>
    %19 = arith.andi %16, %18 : vector<8x1xi1>
    %cst_7 = arith.constant 0.000000e+00 : f32
    %20 = vector.shape_cast %19 : vector<8x1xi1> to vector<8x1xi1>
    %21 = vector.broadcast %20 : vector<8x1xi1> to vector<8x128xi1>
    %22 = vector.broadcast %cst_7 : f32 to vector<8x128xf32>
    %23 = arith.select %21, %11, %22 : vector<8x128xi1>, vector<8x128xf32>
    %c0_8 = arith.constant 0 : index
    %c0_9 = arith.constant 0 : index
    %24 = vector.load %arg12[%c0_8, %c0_9] : memref<32x128xf32, #tpu.memory_space<vmem>>, vector<8x128xf32>
    tpu.vector_store %arg12[%c0_8, %c0_9], %23 {strides = array<i32>} : memref<32x128xf32, #tpu.memory_space<vmem>>, vector<8x128xf32>,
    %c0_10 = arith.constant 0 : index
    %c0_11 = arith.constant 0 : index
    %c0_12 = arith.constant 0 : index
    %25 = vector.load %arg2[%c0_10, %c0_11, %c0_12] : memref<1x16x128xf32, #tpu.memory_space<vmem>>, vector<1x16x128xf32>
    %26 = vector.shape_cast %25 : vector<1x16x128xf32> to vector<16x128xf32>
    %27 = vector.broadcast %1 : vector<1x128xf32> to vector<16x128xf32>
    %28 = arith.mulf %26, %27 : vector<16x128xf32>
    %29 = vector.broadcast %2 : vector<1x128xf32> to vector<16x128xf32>
    %30 = arith.addf %28, %29 : vector<16x128xf32>
    %cst_13 = arith.constant 0.000000e+00 : f32
    %31 = vector.broadcast %cst_13 : f32 to vector<16x128xf32>
    %32 = arith.maximumf %30, %31 : vector<16x128xf32>
    %33 = tpu.iota {dimensions = array<i32: 0>} : vector<16x1xi32>
    %34 = vector.broadcast %0 : i32 to vector<16x1xi32>
    %35 = arith.addi %33, %34 : vector<16x1xi32>
    %c0_i32_14 = arith.constant 0 : i32
    %36 = vector.broadcast %c0_i32_14 : i32 to vector<16x1xi32>
    %37 = arith.cmpi sge, %35, %36 : vector<16x1xi32>
    %c16_i32_15 = arith.constant 16 : i32
    %38 = vector.broadcast %c16_i32_15 : i32 to vector<16x1xi32>
    %39 = arith.cmpi slt, %35, %38 : vector<16x1xi32>
    %40 = arith.andi %37, %39 : vector<16x1xi1>
    %cst_16 = arith.constant 0.000000e+00 : f32
    %41 = vector.shape_cast %40 : vector<16x1xi1> to vector<16x1xi1>
    %42 = vector.broadcast %41 : vector<16x1xi1> to vector<16x128xi1>
    %43 = vector.broadcast %cst_16 : f32 to vector<16x128xf32>
    %44 = arith.select %42, %32, %43 : vector<16x128xi1>, vector<16x128xf32>
    %c8 = arith.constant 8 : index
    %c0_17 = arith.constant 0 : index
    %45 = vector.load %arg12[%c8, %c0_17] : memref<32x128xf32, #tpu.memory_space<vmem>>, vector<16x128xf32>
    tpu.vector_store %arg12[%c8, %c0_17], %44 {strides = array<i32>} : memref<32x128xf32, #tpu.memory_space<vmem>>, vector<16x128xf32>,
    %c0_18 = arith.constant 0 : index
    %c0_19 = arith.constant 0 : index
    %c0_20 = arith.constant 0 : index
    %46 = vector.load %arg4[%c0_18, %c0_19, %c0_20] : memref<1x8x128xf32, #tpu.memory_space<vmem>>, vector<1x8x128xf32>
    %47 = vector.shape_cast %46 : vector<1x8x128xf32> to vector<8x128xf32>
    %c16_i32_21 = arith.constant 16 : i32
    %48 = arith.addi %0, %c16_i32_21 : i32
    %49 = vector.broadcast %1 : vector<1x128xf32> to vector<8x128xf32>
    %50 = arith.mulf %47, %49 : vector<8x128xf32>
    %51 = vector.broadcast %2 : vector<1x128xf32> to vector<8x128xf32>
    %52 = arith.addf %50, %51 : vector<8x128xf32>
    %cst_22 = arith.constant 0.000000e+00 : f32
    %53 = vector.broadcast %cst_22 : f32 to vector<8x128xf32>
    %54 = arith.maximumf %52, %53 : vector<8x128xf32>
    %55 = tpu.iota {dimensions = array<i32: 0>} : vector<8x1xi32>
    %56 = vector.broadcast %48 : i32 to vector<8x1xi32>
    %57 = arith.addi %55, %56 : vector<8x1xi32>
    %c0_i32_23 = arith.constant 0 : i32
    %58 = vector.broadcast %c0_i32_23 : i32 to vector<8x1xi32>
    %59 = arith.cmpi sge, %57, %58 : vector<8x1xi32>
    %c16_i32_24 = arith.constant 16 : i32
    %60 = vector.broadcast %c16_i32_24 : i32 to vector<8x1xi32>
    %61 = arith.cmpi slt, %57, %60 : vector<8x1xi32>
    %62 = arith.andi %59, %61 : vector<8x1xi1>
    %cst_25 = arith.constant 0.000000e+00 : f32
    %63 = vector.shape_cast %62 : vector<8x1xi1> to vector<8x1xi1>
    %64 = vector.broadcast %63 : vector<8x1xi1> to vector<8x128xi1>
    %65 = vector.broadcast %cst_25 : f32 to vector<8x128xf32>
    %66 = arith.select %64, %54, %65 : vector<8x128xi1>, vector<8x128xf32>
    %c24 = arith.constant 24 : index
    %c0_26 = arith.constant 0 : index
    %67 = vector.load %arg12[%c24, %c0_26] : memref<32x128xf32, #tpu.memory_space<vmem>>, vector<8x128xf32>
    tpu.vector_store %arg12[%c24, %c0_26], %66 {strides = array<i32>} : memref<32x128xf32, #tpu.memory_space<vmem>>, vector<8x128xf32>,
    %c7 = arith.constant 7 : index
    %c0_27 = arith.constant 0 : index
    %68 = vector.load %arg12[%c7, %c0_27] : memref<32x128xf32, #tpu.memory_space<vmem>>, vector<16x128xf32>
    %c0_28 = arith.constant 0 : index
    %c0_29 = arith.constant 0 : index
    %69 = vector.load %arg5[%c0_28, %c0_29] : memref<384x128xf32, #tpu.memory_space<vmem>>, vector<128x128xf32>
    %cst_30 = arith.constant dense<0.000000e+00> : vector<16x128xf32>
    %70 = tpu.matmul %68, %69, %cst_30 {dimension_numbers = #tpu.dot_dimension_numbers<[1], [0], [0], [1], [0, 0, 1, 1], [], []>} : vector<16x128xf32>, vector<128x128xf32>, vector<16x128xf32> -> vector<16x128xf32>
    %c8_31 = arith.constant 8 : index
    %c0_32 = arith.constant 0 : index
    %71 = vector.load %arg12[%c8_31, %c0_32] : memref<32x128xf32, #tpu.memory_space<vmem>>, vector<16x128xf32>
    %c128 = arith.constant 128 : index
    %c0_33 = arith.constant 0 : index
    %72 = vector.load %arg5[%c128, %c0_33] : memref<384x128xf32, #tpu.memory_space<vmem>>, vector<128x128xf32>
    %cst_34 = arith.constant dense<0.000000e+00> : vector<16x128xf32>
    %73 = tpu.matmul %71, %72, %cst_34 {dimension_numbers = #tpu.dot_dimension_numbers<[1], [0], [0], [1], [0, 0, 1, 1], [], []>} : vector<16x128xf32>, vector<128x128xf32>, vector<16x128xf32> -> vector<16x128xf32>
    %74 = arith.addf %70, %73 : vector<16x128xf32>
    %c9 = arith.constant 9 : index
    %c0_35 = arith.constant 0 : index
    %75 = vector.load %arg12[%c9, %c0_35] : memref<32x128xf32, #tpu.memory_space<vmem>>, vector<16x128xf32>
    %c256 = arith.constant 256 : index
    %c0_36 = arith.constant 0 : index
    %76 = vector.load %arg5[%c256, %c0_36] : memref<384x128xf32, #tpu.memory_space<vmem>>, vector<128x128xf32>
    %cst_37 = arith.constant dense<0.000000e+00> : vector<16x128xf32>
    %77 = tpu.matmul %75, %76, %cst_37 {dimension_numbers = #tpu.dot_dimension_numbers<[1], [0], [0], [1], [0, 0, 1, 1], [], []>} : vector<16x128xf32>, vector<128x128xf32>, vector<16x128xf32> -> vector<16x128xf32>
    %78 = arith.addf %74, %77 : vector<16x128xf32>
    %c0_38 = arith.constant 0 : index
    %c0_39 = arith.constant 0 : index
    %79 = vector.load %arg6[%c0_38, %c0_39] : memref<1x128xf32, #tpu.memory_space<vmem>>, vector<1x128xf32>
    %80 = vector.broadcast %79 : vector<1x128xf32> to vector<16x128xf32>
    %81 = arith.addf %78, %80 : vector<16x128xf32>
    %82 = vector.shape_cast %81 : vector<16x128xf32> to vector<1x16x128xf32>
    %c0_40 = arith.constant 0 : index
    %c0_41 = arith.constant 0 : index
    %c0_42 = arith.constant 0 : index
    %83 = vector.load %arg9[%c0_40, %c0_41, %c0_42] : memref<1x16x128xf32, #tpu.memory_space<vmem>>, vector<1x16x128xf32>
    tpu.vector_store %arg9[%c0_40, %c0_41, %c0_42], %82 {strides = array<i32>} : memref<1x16x128xf32, #tpu.memory_space<vmem>>, vector<1x16x128xf32>,
    %84 = tpu.iota {dimensions = array<i32: 0>} : vector<16x1xi32>
    %85 = vector.broadcast %0 : i32 to vector<16x1xi32>
    %86 = arith.addi %84, %85 : vector<16x1xi32>
    %c16_i32_43 = arith.constant 16 : i32
    %87 = vector.broadcast %c16_i32_43 : i32 to vector<16x1xi32>
    %88 = arith.cmpi slt, %86, %87 : vector<16x1xi32>
    %cst_44 = arith.constant 0.000000e+00 : f32
    %89 = vector.shape_cast %88 : vector<16x1xi1> to vector<16x1xi1>
    %90 = vector.broadcast %89 : vector<16x1xi1> to vector<16x128xi1>
    %91 = vector.broadcast %cst_44 : f32 to vector<16x128xf32>
    %92 = arith.select %90, %81, %91 : vector<16x128xi1>, vector<16x128xf32>
    %c0_i32_45 = arith.constant 0 : i32
    %93 = arith.cmpi eq, %arg1, %c0_i32_45 : i32
    %94 = arith.extui %93 : i1 to i32
    %c0_i32_46 = arith.constant 0 : i32
    %95 = arith.cmpi ne, %94, %c0_i32_46 : i32
    scf.if %95 {
      %cst_61 = arith.constant 0.000000e+00 : f32
      %109 = vector.broadcast %cst_61 : f32 to vector<1x1x128xf32>
      %c0_62 = arith.constant 0 : index
      %c0_63 = arith.constant 0 : index
      %c0_64 = arith.constant 0 : index
      %110 = vector.load %arg10[%c0_62, %c0_63, %c0_64] : memref<1x1x128xf32, #tpu.memory_space<vmem>>, vector<1x1x128xf32>
      tpu.vector_store %arg10[%c0_62, %c0_63, %c0_64], %109 {strides = array<i32>} : memref<1x1x128xf32, #tpu.memory_space<vmem>>, vector<1x1x128xf32>,
      %cst_65 = arith.constant 0.000000e+00 : f32
      %111 = vector.broadcast %cst_65 : f32 to vector<1x1x128xf32>
      %c0_66 = arith.constant 0 : index
      %c0_67 = arith.constant 0 : index
      %c0_68 = arith.constant 0 : index
      %112 = vector.load %arg11[%c0_66, %c0_67, %c0_68] : memref<1x1x128xf32, #tpu.memory_space<vmem>>, vector<1x1x128xf32>
      tpu.vector_store %arg11[%c0_66, %c0_67, %c0_68], %111 {strides = array<i32>} : memref<1x1x128xf32, #tpu.memory_space<vmem>>, vector<1x1x128xf32>,
    } else {
    }
    %c0_47 = arith.constant 0 : index
    %c0_48 = arith.constant 0 : index
    %c0_49 = arith.constant 0 : index
    %96 = vector.load %arg10[%c0_47, %c0_48, %c0_49] : memref<1x1x128xf32, #tpu.memory_space<vmem>>, vector<1x1x128xf32>
    %cst_50 = arith.constant dense<0.000000e+00> : vector<128xf32>
    %97 = vector.multi_reduction <add>, %92, %cst_50 [0] : vector<16x128xf32> to vector<128xf32>
    %98 = vector.shape_cast %97 : vector<128xf32> to vector<1x128xf32>
    %99 = vector.shape_cast %98 : vector<1x128xf32> to vector<1x1x128xf32>
    %100 = arith.addf %96, %99 : vector<1x1x128xf32>
    %c0_51 = arith.constant 0 : index
    %c0_52 = arith.constant 0 : index
    %c0_53 = arith.constant 0 : index
    %101 = vector.load %arg10[%c0_51, %c0_52, %c0_53] : memref<1x1x128xf32, #tpu.memory_space<vmem>>, vector<1x1x128xf32>
    tpu.vector_store %arg10[%c0_51, %c0_52, %c0_53], %100 {strides = array<i32>} : memref<1x1x128xf32, #tpu.memory_space<vmem>>, vector<1x1x128xf32>,
    %c0_54 = arith.constant 0 : index
    %c0_55 = arith.constant 0 : index
    %c0_56 = arith.constant 0 : index
    %102 = vector.load %arg11[%c0_54, %c0_55, %c0_56] : memref<1x1x128xf32, #tpu.memory_space<vmem>>, vector<1x1x128xf32>
    %103 = arith.mulf %92, %92 : vector<16x128xf32>
    %cst_57 = arith.constant dense<0.000000e+00> : vector<128xf32>
    %104 = vector.multi_reduction <add>, %103, %cst_57 [0] : vector<16x128xf32> to vector<128xf32>
    %105 = vector.shape_cast %104 : vector<128xf32> to vector<1x128xf32>
    %106 = vector.shape_cast %105 : vector<1x128xf32> to vector<1x1x128xf32>
    %107 = arith.addf %102, %106 : vector<1x1x128xf32>
    %c0_58 = arith.constant 0 : index
    %c0_59 = arith.constant 0 : index
    %c0_60 = arith.constant 0 : index
    %108 = vector.load %arg11[%c0_58, %c0_59, %c0_60] : memref<1x1x128xf32, #tpu.memory_space<vmem>>, vector<1x1x128xf32>
    tpu.vector_store %arg11[%c0_58, %c0_59, %c0_60], %107 {strides = array<i32>} : memref<1x1x128xf32, #tpu.memory_space<vmem>>, vector<1x1x128xf32>,
    return
  }
  func.func @transform_0(%arg0: i32, %arg1: i32) -> (i32, i32, i32) {
    %c0_i32 = arith.constant 0 : i32
    %c0_i32_0 = arith.constant 0 : i32
    return %arg0, %arg1, %c0_i32 : i32, i32, i32
  }
  func.func @transform_1(%arg0: i32, %arg1: i32) -> (i32, i32, i32) {
    %c2_i32 = arith.constant 2 : i32
    %0 = arith.muli %arg1, %c2_i32 : i32
    %c1_i32 = arith.constant 1 : i32
    %1 = arith.subi %0, %c1_i32 : i32
    %c0_i32 = arith.constant 0 : i32
    %2 = arith.maxsi %1, %c0_i32 : i32
    %c0_i32_0 = arith.constant 0 : i32
    %c0_i32_1 = arith.constant 0 : i32
    return %arg0, %2, %c0_i32_0 : i32, i32, i32
  }
  func.func @transform_2(%arg0: i32, %arg1: i32) -> (i32, i32, i32) {
    %c1_i32 = arith.constant 1 : i32
    %0 = arith.addi %arg1, %c1_i32 : i32
    %c2_i32 = arith.constant 2 : i32
    %1 = arith.muli %0, %c2_i32 : i32
    %c1_i32_0 = arith.constant 1 : i32
    %2 = arith.minsi %1, %c1_i32_0 : i32
    %c0_i32 = arith.constant 0 : i32
    %c0_i32_1 = arith.constant 0 : i32
    return %arg0, %2, %c0_i32 : i32, i32, i32
  }
  func.func @transform_3(%arg0: i32, %arg1: i32) -> (i32, i32) {
    %c0_i32 = arith.constant 0 : i32
    %c0_i32_0 = arith.constant 0 : i32
    %c0_i32_1 = arith.constant 0 : i32
    return %c0_i32, %c0_i32_0 : i32, i32
  }
  func.func @transform_4(%arg0: i32, %arg1: i32) -> (i32, i32) {
    %c0_i32 = arith.constant 0 : i32
    %c0_i32_0 = arith.constant 0 : i32
    %c0_i32_1 = arith.constant 0 : i32
    return %c0_i32, %c0_i32_0 : i32, i32
  }
  func.func @transform_5(%arg0: i32, %arg1: i32) -> (i32, i32) {
    %c0_i32 = arith.constant 0 : i32
    %c0_i32_0 = arith.constant 0 : i32
    %c0_i32_1 = arith.constant 0 : i32
    return %c0_i32, %c0_i32_0 : i32, i32
  }
  func.func @transform_6(%arg0: i32, %arg1: i32) -> (i32, i32) {
    %c0_i32 = arith.constant 0 : i32
    %c0_i32_0 = arith.constant 0 : i32
    %c0_i32_1 = arith.constant 0 : i32
    return %c0_i32, %c0_i32_0 : i32, i32
  }
  func.func @transform_7(%arg0: i32, %arg1: i32) -> (i32, i32, i32) {
    %c0_i32 = arith.constant 0 : i32
    %c0_i32_0 = arith.constant 0 : i32
    return %arg0, %arg1, %c0_i32 : i32, i32, i32
  }
  func.func @transform_8(%arg0: i32, %arg1: i32) -> (i32, i32, i32) {
    %c0_i32 = arith.constant 0 : i32
    %c0_i32_0 = arith.constant 0 : i32
    %c0_i32_1 = arith.constant 0 : i32
    return %arg0, %c0_i32, %c0_i32_0 : i32, i32, i32
  }
  func.func @transform_9(%arg0: i32, %arg1: i32) -> (i32, i32, i32) {
    %c0_i32 = arith.constant 0 : i32
    %c0_i32_0 = arith.constant 0 : i32
    %c0_i32_1 = arith.constant 0 : i32
    return %arg0, %c0_i32, %c0_i32_0 : i32, i32, i32
  }
}

</mosaic_0001>

<llo_original>
// kernel: _lambda_.5
$region0: #{_lambda_.5}
  #allocation0 [shape = 'u32[]', space=smem, size = 0x4, offset = 0x4, fixed_abs, tag = 'smem constant byte address 0x4 - core index']
  #allocation1 [shape = 'u32[72,128]{1,0:T(1,128)}', space=vmem, size = 0x9000, scoped, tag = 'internal scratch']
  %s0 = inlined_call_operand.vmem [shape: f32[2,16,128], index: 0, kind: input, shape index: {}]
  %s1 = inlined_call_operand.vmem [shape: f32[1,128], index: 1, kind: input, shape index: {}]
  %s2 = inlined_call_operand.vmem [shape: f32[1,128], index: 2, kind: input, shape index: {}]
  %s3 = inlined_call_operand.vmem [shape: f32[2,128,16], index: 3, kind: output, shape index: {}]
  %s4 = sld [smem:[#allocation0]]
  $region45: #{_lambda_.5} parent=0
    _
  %s6 = ssub.s32 1, %s4
  %s7 = scalar_select 0, %s6, %s4
  loop: start=0, step=1, limit=4
  $region2: #{_lambda_.5} parent=0 // loop_pre_header
    _
  $region3: #{_lambda_.5} parent=0 // loop_header
    %s9 = sphi 0, %s13
    %p10 = scmp.ge.s32.totalorder %s9, 4
    %s16 = sphi 0, %s28
    %s17 = sphi 0, %s24
    %s18 = sphi 0, %s16
    %s19 = sphi 0, %s17
    %s20 = sphi 0, %s18
    %s21 = sphi 0, %s19
    %s33 = sphi 0, %s35
    %s36 = sphi 0, %s33
    %s37 = sphi 0, %s36
    %s53 = sphi 0, %s37
    %s57 = sphi 0, %s57
    %s59 = sphi 0, %s57
    %s60 = sphi 0, %s59
    %s74 = sphi 0, %s60
    %s78 = sphi 0, %s78
    %s80 = sphi 0, %s78
    %s81 = sphi 0, %s80
    %s95 = sphi 0, %s81
    %s103 = sphi 0, %s105
    %s106 = sphi 0, %s103
    %s107 = sphi 0, %s106
    %s123 = sphi 0, %s107
  $region4: #{_lambda_.5} parent=0 // loop_header_branch
    %12 = sbr.rel (%p10) target = $region8
  $region5: #{_lambda_.5} parent=0 // loop_body
    %s14 = ssub.s32 %s9, 1
    %s15 = ssub.s32 %s9, 2
    %s22 = sadd.s32 1, %s17
    %p23 = scmp.ge.s32.totalorder %s22, 1
    %s24 = scalar_select %p23, 0, %s22
    %s25 = sadd.s32 1, %s16
    %s26 = scalar_select %p23, %s25, %s16
    %p27 = scmp.ge.s32.totalorder %s26, 2
    %s28 = scalar_select %p27, 0, %s26
    %s29 = ssub.s32 %s16, %s28
    %s30 = ssub.s32 %s17, %s24
    %s31 = sor.u32 %s29, %s30
    %p32 = scmp.eq.s32.totalorder %s31, 0
    %s34 = sadd.s32 %s33, 1
    %s35 = scalar_select %p32, %s33, %s34
    %p38 = pneg %p32
    %p39 = scmp.eq.s32.totalorder %s9, 1
    %p40 = por %p38, %p39
    %p41 = scmp.ne.s32.totalorder %s33, %s36
    %p42 = scmp.eq.s32.totalorder %s9, 0
    %p43 = por %p41, %p42
    %p44 = scmp.ne.s32.totalorder %s33, %s36
    %p45 = scmp.eq.s32.totalorder %s14, 1
    %p46 = por %p44, %p45
    %p47 = scmp.ne.s32.totalorder %s36, %s37
    %p48 = scmp.eq.s32.totalorder %s14, 0
    %p49 = por %p47, %p48
    %p50 = scmp.ne.s32.totalorder %s36, %s37
    %p51 = scmp.eq.s32.totalorder %s15, 1
    %p52 = por %p50, %p51
    %p54 = scmp.ne.s32.totalorder %s37, %s53
    %p55 = scmp.eq.s32.totalorder %s15, 0
    %p56 = por %p54, %p55
    %s58 = sadd.s32 %s57, 1
    %p61 = scmp.eq.s32.totalorder %s9, 1
    %p62 = scmp.ne.s32.totalorder %s57, %s59
    %p63 = scmp.eq.s32.totalorder %s9, 0
    %p64 = por %p62, %p63
    %p65 = scmp.ne.s32.totalorder %s57, %s59
    %p66 = scmp.eq.s32.totalorder %s14, 1
    %p67 = por %p65, %p66
    %p68 = scmp.ne.s32.totalorder %s59, %s60
    %p69 = scmp.eq.s32.totalorder %s14, 0
    %p70 = por %p68, %p69
    %p71 = scmp.ne.s32.totalorder %s59, %s60
    %p72 = scmp.eq.s32.totalorder %s15, 1
    %p73 = por %p71, %p72
    %p75 = scmp.ne.s32.totalorder %s60, %s74
    %p76 = scmp.eq.s32.totalorder %s15, 0
    %p77 = por %p75, %p76
    %s79 = sadd.s32 %s78, 1
    %p82 = scmp.eq.s32.totalorder %s9, 1
    %p83 = scmp.ne.s32.totalorder %s78, %s80
    %p84 = scmp.eq.s32.totalorder %s9, 0
    %p85 = por %p83, %p84
    %p86 = scmp.ne.s32.totalorder %s78, %s80
    %p87 = scmp.eq.s32.totalorder %s14, 1
    %p88 = por %p86, %p87
    %p89 = scmp.ne.s32.totalorder %s80, %s81
    %p90 = scmp.eq.s32.totalorder %s14, 0
    %p91 = por %p89, %p90
    %p92 = scmp.ne.s32.totalorder %s80, %s81
    %p93 = scmp.eq.s32.totalorder %s15, 1
    %p94 = por %p92, %p93
    %p96 = scmp.ne.s32.totalorder %s81, %s95
    %p97 = scmp.eq.s32.totalorder %s15, 0
    %p98 = por %p96, %p97
    %s99 = ssub.s32 %s16, %s28
    %s100 = ssub.s32 %s17, %s24
    %s101 = sor.u32 %s99, %s100
    %p102 = scmp.eq.s32.totalorder %s101, 0
    %s104 = sadd.s32 %s103, 1
    %s105 = scalar_select %p102, %s103, %s104
    %p108 = pneg %p102
    %p109 = scmp.eq.s32.totalorder %s9, 1
    %p110 = por %p108, %p109
    %p111 = scmp.ne.s32.totalorder %s103, %s106
    %p112 = scmp.eq.s32.totalorder %s9, 0
    %p113 = por %p111, %p112
    %p114 = scmp.ne.s32.totalorder %s103, %s106
    %p115 = scmp.eq.s32.totalorder %s14, 1
    %p116 = por %p114, %p115
    %p117 = scmp.ne.s32.totalorder %s106, %s107
    %p118 = scmp.eq.s32.totalorder %s14, 0
    %p119 = por %p117, %p118
    %p120 = scmp.ne.s32.totalorder %s106, %s107
    %p121 = scmp.eq.s32.totalorder %s15, 1
    %p122 = por %p120, %p121
    %p124 = scmp.ne.s32.totalorder %s107, %s123
    %p125 = scmp.eq.s32.totalorder %s15, 0
    %p126 = por %p124, %p125
    %p127 = scmp.le.s32.totalorder 1, %s9
    %p128 = scmp.lt.s32.totalorder %s9, 3
    %p129 = pnand %p127, %p128
    %p130 = pneg %p129
    // Predicated region
    $region9: #{_lambda_.5} parent=5 // pred_check
      _
    $region10: #{_lambda_.5} parent=5 // pred_check_branch
      %132 = sbr.rel (%p129) target = $region12
    $region11: #{_lambda_.5} parent=5 // pred_region
      %s133 = ssub.s32 %s9, 1
      // Predicated region
      $region13: #{_lambda_.5} parent=11 // pred_check
        %p134 = pneg %p70
      $region14: #{_lambda_.5} parent=11 // pred_check_branch
        %136 = sbr.rel (%p134) target = $region16
      $region15: #{_lambda_.5} parent=11 // pred_region
        _
      $region16: #{_lambda_.5} parent=11 // pred_fallthru
        _
      // Predicated region
      $region17: #{_lambda_.5} parent=11 // pred_check
        %p137 = pneg %p91
      $region18: #{_lambda_.5} parent=11 // pred_check_branch
        %139 = sbr.rel (%p137) target = $region20
      $region19: #{_lambda_.5} parent=11 // pred_region
        _
      $region20: #{_lambda_.5} parent=11 // pred_fallthru
        _
    $region12: #{_lambda_.5} parent=5 // pred_fallthru
      _
    %p140 = scmp.lt.s32.totalorder %s9, 2
    // Predicated region
    $region21: #{_lambda_.5} parent=5 // pred_check
      %p141 = pneg %p140
    $region22: #{_lambda_.5} parent=5 // pred_check_branch
      %143 = sbr.rel (%p141) target = $region24
    $region23: #{_lambda_.5} parent=5 // pred_region
      // Predicated region
      $region25: #{_lambda_.5} parent=23 // pred_check
        %p144 = pneg %p43
      $region26: #{_lambda_.5} parent=23 // pred_check_branch
        %146 = sbr.rel (%p144) target = $region28
      $region27: #{_lambda_.5} parent=23 // pred_region
        %s147 = smul.u32 2, %s17
        %p148 = scmp.lt.s32.totalorder %s16, 1
        %s149 = scalar_select %p148, %s16, 1
        %p150 = scmp.lt.s32.totalorder %s147, 1
        %s151 = scalar_select %p150, %s147, 1
        %s152 = smul.addr %s149, 2
        %s153 = sadd.s32 %s151, %s152
        %s154 = smul.addr %s153, 8
        %s155 = scalar_lea.vmem %s0, %s154
        %s156 = smul.u32 2, %s17
      $region28: #{_lambda_.5} parent=23 // pred_fallthru
        _
    $region24: #{_lambda_.5} parent=5 // pred_fallthru
      _
    %p157 = scmp.le.s32.totalorder 1, %s9
    %p158 = scmp.lt.s32.totalorder %s9, 3
    %p159 = pnand %p157, %p158
    %p160 = pneg %p159
    // Predicated region
    $region29: #{_lambda_.5} parent=5 // pred_check
      _
    $region30: #{_lambda_.5} parent=5 // pred_check_branch
      %162 = sbr.rel (%p159) target = $region32
    $region31: #{_lambda_.5} parent=5 // pred_region
      %s163 = ssub.s32 %s9, 1
      %s164 = smul.u32 2, %s19
      %p165 = scmp.lt.s32.totalorder %s18, 1
      %s166 = scalar_select %p165, %s18, 1
      %p167 = scmp.lt.s32.totalorder %s164, 1
      %s168 = scalar_select %p167, %s164, 1
      %s169 = smul.addr %s166, 2
      %s170 = sadd.s32 %s168, %s169
      %s171 = smul.addr %s170, 8
      %s172 = scalar_lea.vmem %s0, %s171
      %p173 = pneg %p49
      %p174 = pneg %p46
      %p175 = pneg %p70
      %p176 = pneg %p67
      %p177 = pneg %p91
      %p178 = pneg %p88
      %p179 = pneg %p119
      %p180 = pneg %p116
      %p181 = scmp.lt.s32.totalorder %s18, 1
      %s182 = scalar_select %p181, %s18, 1
      %p183 = scmp.lt.s32.totalorder %s19, 0
      %s184 = scalar_select %p183, %s19, 0
      %s185 = smul.addr %s182, 16
      %s186 = sadd.s32 %s184, %s185
      %s187 = smul.addr %s186, 8
      %s188 = scalar_lea.vmem %s3, %s187
      %s189 = smul.u32 2, %s19
      %p190 = scmp.lt.s32.totalorder %s18, 1
      %s191 = scalar_select %p190, %s18, 1
      %p192 = scmp.lt.s32.totalorder %s189, 1
      %s193 = scalar_select %p192, %s189, 1
      %s194 = smul.addr %s191, 2
      %s195 = sadd.s32 %s193, %s194
      %s196 = smul.addr %s195, 8
      %s197 = scalar_lea.vmem %s0, %s196
      %s198 = smul.u32 2, %s19
      %p199 = scmp.lt.s32.totalorder %s18, 1
      %s200 = scalar_select %p199, %s18, 1
      %p201 = scmp.lt.s32.totalorder %s19, 0
      %s202 = scalar_select %p201, %s19, 0
      %s203 = smul.addr %s200, 16
      %s204 = sadd.s32 %s202, %s203
      %s205 = smul.addr %s204, 8
      %s206 = scalar_lea.vmem %s3, %s205
      %v207 = vld [vmem:[%s197] sm:$0xff]
      %v208 = vld [vmem:[%s197 + $0x8] sm:$0xff]
      %v209 = vld [vmem:[%s1] sm:$0x1]
      %v211 = vperm.slane %v209, 0
      %v213 = vmul.f32 %v207, %v211
      %v214 = vmul.f32 %v208, %v211
      %v215 = vld [vmem:[%s2] sm:$0x1]
      %v217 = vperm.slane %v215, 0
      %v219 = vadd.f32 %v213, %v217
      %v220 = vadd.f32 %v214, %v217
      %v221 = vmax.f32 %v219, 0.0
      %v222 = vmax.f32 %v220, 0.0
      %223 = vxpose.xlu0.b32.start [1/16] %v221, 128
      %224 = vxpose.xlu0.b32.cont [2/16] %v222, 128
      %225 = vxpose.xlu0.b32.cont [3/16] 0.0, 128
      %226 = vxpose.xlu0.b32.cont [4/16] 0.0, 128
      %227 = vxpose.xlu0.b32.cont [5/16] 0.0, 128
      %228 = vxpose.xlu0.b32.cont [6/16] 0.0, 128
      %229 = vxpose.xlu0.b32.cont [7/16] 0.0, 128
      %230 = vxpose.xlu0.b32.cont [8/16] 0.0, 128
      %231 = vxpose.xlu0.b32.cont [9/16] 0.0, 128
      %232 = vxpose.xlu0.b32.cont [10/16] 0.0, 128
      %233 = vxpose.xlu0.b32.cont [11/16] 0.0, 128
      %234 = vxpose.xlu0.b32.cont [12/16] 0.0, 128
      %235 = vxpose.xlu0.b32.cont [13/16] 0.0, 128
      %236 = vxpose.xlu0.b32.cont [14/16] 0.0, 128
      %237 = vxpose.xlu0.b32.cont [15/16] 0.0, 128
      %238 = vxpose.xlu0.b32.end [16/16] 0.0, 128
      %v239 = vpop.trf.xlu0
      %v240 = vpop.trf.xlu0
      %v241 = vpop.trf.xlu0
      %v242 = vpop.trf.xlu0
      %v243 = vpop.trf.xlu0
      %v244 = vpop.trf.xlu0
      %v245 = vpop.trf.xlu0
      %v246 = vpop.trf.xlu0
      %v247 = vpop.trf.xlu0
      %v248 = vpop.trf.xlu0
      %v249 = vpop.trf.xlu0
      %v250 = vpop.trf.xlu0
      %v251 = vpop.trf.xlu0
      %v252 = vpop.trf.xlu0
      %v253 = vpop.trf.xlu0
      %v254 = vpop.trf.xlu0
      %vm255 = vcmask 130048
      %256 = vst.msk [vmem:[%s206] sm:$0xff] %vm255, %v239
      %257 = vst.msk [vmem:[%s206 + $0x8] sm:$0xff] %vm255, %v240
      %258 = vst.msk [vmem:[%s206 + $0x10] sm:$0xff] %vm255, %v241
      %259 = vst.msk [vmem:[%s206 + $0x18] sm:$0xff] %vm255, %v242
      %260 = vst.msk [vmem:[%s206 + $0x20] sm:$0xff] %vm255, %v243
      %261 = vst.msk [vmem:[%s206 + $0x28] sm:$0xff] %vm255, %v244
      %262 = vst.msk [vmem:[%s206 + $0x30] sm:$0xff] %vm255, %v245
      %263 = vst.msk [vmem:[%s206 + $0x38] sm:$0xff] %vm255, %v246
      %264 = vst.msk [vmem:[%s206 + $0x40] sm:$0xff] %vm255, %v247
      %265 = vst.msk [vmem:[%s206 + $0x48] sm:$0xff] %vm255, %v248
      %266 = vst.msk [vmem:[%s206 + $0x50] sm:$0xff] %vm255, %v249
      %267 = vst.msk [vmem:[%s206 + $0x58] sm:$0xff] %vm255, %v250
      %268 = vst.msk [vmem:[%s206 + $0x60] sm:$0xff] %vm255, %v251
      %269 = vst.msk [vmem:[%s206 + $0x68] sm:$0xff] %vm255, %v252
      %270 = vst.msk [vmem:[%s206 + $0x70] sm:$0xff] %vm255, %v253
      %271 = vst.msk [vmem:[%s206 + $0x78] sm:$0xff] %vm255, %v254
      %p272 = scmp.lt.s32.totalorder %s18, 1
      %s273 = scalar_select %p272, %s18, 1
      %p274 = scmp.lt.s32.totalorder %s19, 0
      %s275 = scalar_select %p274, %s19, 0
      %s276 = smul.addr %s273, 16
      %s277 = sadd.s32 %s275, %s276
      %s278 = smul.addr %s277, 8
      %s279 = scalar_lea.vmem %s3, %s278
      // Predicated region
      $region33: #{_lambda_.5} parent=31 // pred_check
        %p280 = pneg %p116
      $region34: #{_lambda_.5} parent=31 // pred_check_branch
        %282 = sbr.rel (%p280) target = $region36
      $region35: #{_lambda_.5} parent=31 // pred_region
        _
      $region36: #{_lambda_.5} parent=31 // pred_fallthru
        _
    $region32: #{_lambda_.5} parent=5 // pred_fallthru
      _
    %p283 = scmp.le.s32.totalorder 2, %s9
    // Predicated region
    $region37: #{_lambda_.5} parent=5 // pred_check
      %p284 = pneg %p283
    $region38: #{_lambda_.5} parent=5 // pred_check_branch
      %286 = sbr.rel (%p284) target = $region40
    $region39: #{_lambda_.5} parent=5 // pred_region
      %s287 = ssub.s32 %s9, 2
      // Predicated region
      $region41: #{_lambda_.5} parent=39 // pred_check
        %p288 = pneg %p122
      $region42: #{_lambda_.5} parent=39 // pred_check_branch
        %290 = sbr.rel (%p288) target = $region44
      $region43: #{_lambda_.5} parent=39 // pred_region
        %p291 = scmp.lt.s32.totalorder %s20, 1
        %s292 = scalar_select %p291, %s20, 1
        %p293 = scmp.lt.s32.totalorder %s21, 0
        %s294 = scalar_select %p293, %s21, 0
        %s295 = smul.addr %s292, 16
        %s296 = sadd.s32 %s294, %s295
        %s297 = smul.addr %s296, 8
        %s298 = scalar_lea.vmem %s3, %s297
      $region44: #{_lambda_.5} parent=39 // pred_fallthru
        _
    $region40: #{_lambda_.5} parent=5 // pred_fallthru
      _
  $region6: #{_lambda_.5} parent=0 // loop_footer
    %s13 = sadd.s32 1, %s9
  $region7: #{_lambda_.5} parent=0 // loop_footer_branch
    %8 = sbr.rel target = $region3
  $region8: #{_lambda_.5} parent=0 // loop_exit
    _

// kernel: _lambda_.3
$region0: #{_lambda_.3}
  #allocation0 [shape = 'u32[]', space=smem, size = 0x4, offset = 0x4, fixed_abs, tag = 'smem constant byte address 0x4 - core index']
  #allocation1 [shape = 'u32[72,128]{1,0:T(1,128)}', space=vmem, size = 0x9000, scoped, tag = 'internal scratch']
  #allocation2 [shape = 'f32[32,128]{1,0:T(8,128)}', space=vmem, size = 0x4000, scoped, tag = 'scratch operand']
  %s0 = inlined_call_operand.vmem [shape: f32[2,16,128], index: 0, kind: input, shape index: {}, may-alias: {0,1,2}]
  %s1 = inlined_call_operand.vmem [shape: f32[2,16,128], index: 1, kind: input, shape index: {}, may-alias: {0,1,2}]
  %s2 = inlined_call_operand.vmem [shape: f32[2,16,128], index: 2, kind: input, shape index: {}, may-alias: {0,1,2}]
  %s3 = inlined_call_operand.vmem [shape: f32[384,128], index: 3, kind: input, shape index: {}]
  %s4 = inlined_call_operand.vmem [shape: f32[1,128], index: 4, kind: input, shape index: {}]
  %s5 = inlined_call_operand.vmem [shape: f32[1,128], index: 5, kind: input, shape index: {}]
  %s6 = inlined_call_operand.vmem [shape: f32[1,128], index: 6, kind: input, shape index: {}]
  %s7 = inlined_call_operand.vmem [shape: f32[2,16,128], index: 7, kind: output, shape index: {0}]
  %s8 = inlined_call_operand.vmem [shape: f32[2,1,128], index: 8, kind: output, shape index: {1}]
  %s9 = inlined_call_operand.vmem [shape: f32[2,1,128], index: 9, kind: output, shape index: {2}]
  %10 = xla_tuple %s7, %s8, %s9
  %s11 = sld [smem:[#allocation0]]
  $region81: #{_lambda_.3} parent=0
    _
  %s13 = ssub.s32 1, %s11
  %s14 = scalar_select 0, %s13, %s11
  loop: start=0, step=1, limit=4
  $region2: #{_lambda_.3} parent=0 // loop_pre_header
    _
  $region3: #{_lambda_.3} parent=0 // loop_header
    %s16 = sphi 0, %s20
    %p17 = scmp.ge.s32.totalorder %s16, 4
    %s23 = sphi 0, %s35
    %s24 = sphi 0, %s31
    %s25 = sphi 0, %s23
    %s26 = sphi 0, %s24
    %s27 = sphi 0, %s25
    %s28 = sphi 0, %s26
    %s40 = sphi 0, %s42
    %s43 = sphi 0, %s40
    %s44 = sphi 0, %s43
    %s60 = sphi 0, %s44
    %s76 = sphi 0, %s78
    %s79 = sphi 0, %s76
    %s80 = sphi 0, %s79
    %s96 = sphi 0, %s80
    %s112 = sphi 0, %s114
    %s115 = sphi 0, %s112
    %s116 = sphi 0, %s115
    %s132 = sphi 0, %s116
    %s136 = sphi 0, %s136
    %s138 = sphi 0, %s136
    %s139 = sphi 0, %s138
    %s153 = sphi 0, %s139
    %s157 = sphi 0, %s157
    %s159 = sphi 0, %s157
    %s160 = sphi 0, %s159
    %s174 = sphi 0, %s160
    %s178 = sphi 0, %s178
    %s180 = sphi 0, %s178
    %s181 = sphi 0, %s180
    %s195 = sphi 0, %s181
    %s199 = sphi 0, %s199
    %s201 = sphi 0, %s199
    %s202 = sphi 0, %s201
    %s216 = sphi 0, %s202
    %s224 = sphi 0, %s226
    %s227 = sphi 0, %s224
    %s228 = sphi 0, %s227
    %s244 = sphi 0, %s228
    %s250 = sphi 0, %s252
    %s253 = sphi 0, %s250
    %s254 = sphi 0, %s253
    %s270 = sphi 0, %s254
    %s276 = sphi 0, %s278
    %s279 = sphi 0, %s276
    %s280 = sphi 0, %s279
    %s296 = sphi 0, %s280
  $region4: #{_lambda_.3} parent=0 // loop_header_branch
    %19 = sbr.rel (%p17) target = $region8
  $region5: #{_lambda_.3} parent=0 // loop_body
    %s21 = ssub.s32 %s16, 1
    %s22 = ssub.s32 %s16, 2
    %s29 = sadd.s32 1, %s24
    %p30 = scmp.ge.s32.totalorder %s29, 1
    %s31 = scalar_select %p30, 0, %s29
    %s32 = sadd.s32 1, %s23
    %s33 = scalar_select %p30, %s32, %s23
    %p34 = scmp.ge.s32.totalorder %s33, 2
    %s35 = scalar_select %p34, 0, %s33
    %s36 = ssub.s32 %s23, %s35
    %s37 = ssub.s32 %s24, %s31
    %s38 = sor.u32 %s36, %s37
    %p39 = scmp.eq.s32.totalorder %s38, 0
    %s41 = sadd.s32 %s40, 1
    %s42 = scalar_select %p39, %s40, %s41
    %p45 = pneg %p39
    %p46 = scmp.eq.s32.totalorder %s16, 1
    %p47 = por %p45, %p46
    %p48 = scmp.ne.s32.totalorder %s40, %s43
    %p49 = scmp.eq.s32.totalorder %s16, 0
    %p50 = por %p48, %p49
    %p51 = scmp.ne.s32.totalorder %s40, %s43
    %p52 = scmp.eq.s32.totalorder %s21, 1
    %p53 = por %p51, %p52
    %p54 = scmp.ne.s32.totalorder %s43, %s44
    %p55 = scmp.eq.s32.totalorder %s21, 0
    %p56 = por %p54, %p55
    %p57 = scmp.ne.s32.totalorder %s43, %s44
    %p58 = scmp.eq.s32.totalorder %s22, 1
    %p59 = por %p57, %p58
    %p61 = scmp.ne.s32.totalorder %s44, %s60
    %p62 = scmp.eq.s32.totalorder %s22, 0
    %p63 = por %p61, %p62
    %s64 = smul.u32 %s24, 2
    %s65 = ssub.s32 %s64, 1
    %p66 = scmp.gt.s32.totalorder %s65, 0
    %s67 = scalar_select %p66, %s65, 0
    %s68 = smul.u32 %s31, 2
    %s69 = ssub.s32 %s68, 1
    %p70 = scmp.gt.s32.totalorder %s69, 0
    %s71 = scalar_select %p70, %s69, 0
    %s72 = ssub.s32 %s23, %s35
    %s73 = ssub.s32 %s67, %s71
    %s74 = sor.u32 %s72, %s73
    %p75 = scmp.eq.s32.totalorder %s74, 0
    %s77 = sadd.s32 %s76, 1
    %s78 = scalar_select %p75, %s76, %s77
    %p81 = pneg %p75
    %p82 = scmp.eq.s32.totalorder %s16, 1
    %p83 = por %p81, %p82
    %p84 = scmp.ne.s32.totalorder %s76, %s79
    %p85 = scmp.eq.s32.totalorder %s16, 0
    %p86 = por %p84, %p85
    %p87 = scmp.ne.s32.totalorder %s76, %s79
    %p88 = scmp.eq.s32.totalorder %s21, 1
    %p89 = por %p87, %p88
    %p90 = scmp.ne.s32.totalorder %s79, %s80
    %p91 = scmp.eq.s32.totalorder %s21, 0
    %p92 = por %p90, %p91
    %p93 = scmp.ne.s32.totalorder %s79, %s80
    %p94 = scmp.eq.s32.totalorder %s22, 1
    %p95 = por %p93, %p94
    %p97 = scmp.ne.s32.totalorder %s80, %s96
    %p98 = scmp.eq.s32.totalorder %s22, 0
    %p99 = por %p97, %p98
    %s100 = sadd.s32 %s24, 1
    %s101 = smul.u32 %s100, 2
    %p102 = scmp.lt.s32.totalorder %s101, 1
    %s103 = scalar_select %p102, %s101, 1
    %s104 = sadd.s32 %s31, 1
    %s105 = smul.u32 %s104, 2
    %p106 = scmp.lt.s32.totalorder %s105, 1
    %s107 = scalar_select %p106, %s105, 1
    %s108 = ssub.s32 %s23, %s35
    %s109 = ssub.s32 %s103, %s107
    %s110 = sor.u32 %s108, %s109
    %p111 = scmp.eq.s32.totalorder %s110, 0
    %s113 = sadd.s32 %s112, 1
    %s114 = scalar_select %p111, %s112, %s113
    %p117 = pneg %p111
    %p118 = scmp.eq.s32.totalorder %s16, 1
    %p119 = por %p117, %p118
    %p120 = scmp.ne.s32.totalorder %s112, %s115
    %p121 = scmp.eq.s32.totalorder %s16, 0
    %p122 = por %p120, %p121
    %p123 = scmp.ne.s32.totalorder %s112, %s115
    %p124 = scmp.eq.s32.totalorder %s21, 1
    %p125 = por %p123, %p124
    %p126 = scmp.ne.s32.totalorder %s115, %s116
    %p127 = scmp.eq.s32.totalorder %s21, 0
    %p128 = por %p126, %p127
    %p129 = scmp.ne.s32.totalorder %s115, %s116
    %p130 = scmp.eq.s32.totalorder %s22, 1
    %p131 = por %p129, %p130
    %p133 = scmp.ne.s32.totalorder %s116, %s132
    %p134 = scmp.eq.s32.totalorder %s22, 0
    %p135 = por %p133, %p134
    %s137 = sadd.s32 %s136, 1
    %p140 = scmp.eq.s32.totalorder %s16, 1
    %p141 = scmp.ne.s32.totalorder %s136, %s138
    %p142 = scmp.eq.s32.totalorder %s16, 0
    %p143 = por %p141, %p142
    %p144 = scmp.ne.s32.totalorder %s136, %s138
    %p145 = scmp.eq.s32.totalorder %s21, 1
    %p146 = por %p144, %p145
    %p147 = scmp.ne.s32.totalorder %s138, %s139
    %p148 = scmp.eq.s32.totalorder %s21, 0
    %p149 = por %p147, %p148
    %p150 = scmp.ne.s32.totalorder %s138, %s139
    %p151 = scmp.eq.s32.totalorder %s22, 1
    %p152 = por %p150, %p151
    %p154 = scmp.ne.s32.totalorder %s139, %s153
    %p155 = scmp.eq.s32.totalorder %s22, 0
    %p156 = por %p154, %p155
    %s158 = sadd.s32 %s157, 1
    %p161 = scmp.eq.s32.totalorder %s16, 1
    %p162 = scmp.ne.s32.totalorder %s157, %s159
    %p163 = scmp.eq.s32.totalorder %s16, 0
    %p164 = por %p162, %p163
    %p165 = scmp.ne.s32.totalorder %s157, %s159
    %p166 = scmp.eq.s32.totalorder %s21, 1
    %p167 = por %p165, %p166
    %p168 = scmp.ne.s32.totalorder %s159, %s160
    %p169 = scmp.eq.s32.totalorder %s21, 0
    %p170 = por %p168, %p169
    %p171 = scmp.ne.s32.totalorder %s159, %s160
    %p172 = scmp.eq.s32.totalorder %s22, 1
    %p173 = por %p171, %p172
    %p175 = scmp.ne.s32.totalorder %s160, %s174
    %p176 = scmp.eq.s32.totalorder %s22, 0
    %p177 = por %p175, %p176
    %s179 = sadd.s32 %s178, 1
    %p182 = scmp.eq.s32.totalorder %s16, 1
    %p183 = scmp.ne.s32.totalorder %s178, %s180
    %p184 = scmp.eq.s32.totalorder %s16, 0
    %p185 = por %p183, %p184
    %p186 = scmp.ne.s32.totalorder %s178, %s180
    %p187 = scmp.eq.s32.totalorder %s21, 1
    %p188 = por %p186, %p187
    %p189 = scmp.ne.s32.totalorder %s180, %s181
    %p190 = scmp.eq.s32.totalorder %s21, 0
    %p191 = por %p189, %p190
    %p192 = scmp.ne.s32.totalorder %s180, %s181
    %p193 = scmp.eq.s32.totalorder %s22, 1
    %p194 = por %p192, %p193
    %p196 = scmp.ne.s32.totalorder %s181, %s195
    %p197 = scmp.eq.s32.totalorder %s22, 0
    %p198 = por %p196, %p197
    %s200 = sadd.s32 %s199, 1
    %p203 = scmp.eq.s32.totalorder %s16, 1
    %p204 = scmp.ne.s32.totalorder %s199, %s201
    %p205 = scmp.eq.s32.totalorder %s16, 0
    %p206 = por %p204, %p205
    %p207 = scmp.ne.s32.totalorder %s199, %s201
    %p208 = scmp.eq.s32.totalorder %s21, 1
    %p209 = por %p207, %p208
    %p210 = scmp.ne.s32.totalorder %s201, %s202
    %p211 = scmp.eq.s32.totalorder %s21, 0
    %p212 = por %p210, %p211
    %p213 = scmp.ne.s32.totalorder %s201, %s202
    %p214 = scmp.eq.s32.totalorder %s22, 1
    %p215 = por %p213, %p214
    %p217 = scmp.ne.s32.totalorder %s202, %s216
    %p218 = scmp.eq.s32.totalorder %s22, 0
    %p219 = por %p217, %p218
    %s220 = ssub.s32 %s23, %s35
    %s221 = ssub.s32 %s24, %s31
    %s222 = sor.u32 %s220, %s221
    %p223 = scmp.eq.s32.totalorder %s222, 0
    %s225 = sadd.s32 %s224, 1
    %s226 = scalar_select %p223, %s224, %s225
    %p229 = pneg %p223
    %p230 = scmp.eq.s32.totalorder %s16, 1
    %p231 = por %p229, %p230
    %p232 = scmp.ne.s32.totalorder %s224, %s227
    %p233 = scmp.eq.s32.totalorder %s16, 0
    %p234 = por %p232, %p233
    %p235 = scmp.ne.s32.totalorder %s224, %s227
    %p236 = scmp.eq.s32.totalorder %s21, 1
    %p237 = por %p235, %p236
    %p238 = scmp.ne.s32.totalorder %s227, %s228
    %p239 = scmp.eq.s32.totalorder %s21, 0
    %p240 = por %p238, %p239
    %p241 = scmp.ne.s32.totalorder %s227, %s228
    %p242 = scmp.eq.s32.totalorder %s22, 1
    %p243 = por %p241, %p242
    %p245 = scmp.ne.s32.totalorder %s228, %s244
    %p246 = scmp.eq.s32.totalorder %s22, 0
    %p247 = por %p245, %p246
    %s248 = ssub.s32 %s23, %s35
    %p249 = scmp.eq.s32.totalorder %s248, 0
    %s251 = sadd.s32 %s250, 1
    %s252 = scalar_select %p249, %s250, %s251
    %p255 = pneg %p249
    %p256 = scmp.eq.s32.totalorder %s16, 1
    %p257 = por %p255, %p256
    %p258 = scmp.ne.s32.totalorder %s250, %s253
    %p259 = scmp.eq.s32.totalorder %s16, 0
    %p260 = por %p258, %p259
    %p261 = scmp.ne.s32.totalorder %s250, %s253
    %p262 = scmp.eq.s32.totalorder %s21, 1
    %p263 = por %p261, %p262
    %p264 = scmp.ne.s32.totalorder %s253, %s254
    %p265 = scmp.eq.s32.totalorder %s21, 0
    %p266 = por %p264, %p265
    %p267 = scmp.ne.s32.totalorder %s253, %s254
    %p268 = scmp.eq.s32.totalorder %s22, 1
    %p269 = por %p267, %p268
    %p271 = scmp.ne.s32.totalorder %s254, %s270
    %p272 = scmp.eq.s32.totalorder %s22, 0
    %p273 = por %p271, %p272
    %s274 = ssub.s32 %s23, %s35
    %p275 = scmp.eq.s32.totalorder %s274, 0
    %s277 = sadd.s32 %s276, 1
    %s278 = scalar_select %p275, %s276, %s277
    %p281 = pneg %p275
    %p282 = scmp.eq.s32.totalorder %s16, 1
    %p283 = por %p281, %p282
    %p284 = scmp.ne.s32.totalorder %s276, %s279
    %p285 = scmp.eq.s32.totalorder %s16, 0
    %p286 = por %p284, %p285
    %p287 = scmp.ne.s32.totalorder %s276, %s279
    %p288 = scmp.eq.s32.totalorder %s21, 1
    %p289 = por %p287, %p288
    %p290 = scmp.ne.s32.totalorder %s279, %s280
    %p291 = scmp.eq.s32.totalorder %s21, 0
    %p292 = por %p290, %p291
    %p293 = scmp.ne.s32.totalorder %s279, %s280
    %p294 = scmp.eq.s32.totalorder %s22, 1
    %p295 = por %p293, %p294
    %p297 = scmp.ne.s32.totalorder %s280, %s296
    %p298 = scmp.eq.s32.totalorder %s22, 0
    %p299 = por %p297, %p298
    %p300 = scmp.le.s32.totalorder 1, %s16
    %p301 = scmp.lt.s32.totalorder %s16, 3
    %p302 = pnand %p300, %p301
    %p303 = pneg %p302
    // Predicated region
    $region9: #{_lambda_.3} parent=5 // pred_check
      _
    $region10: #{_lambda_.3} parent=5 // pred_check_branch
      %305 = sbr.rel (%p302) target = $region12
    $region11: #{_lambda_.3} parent=5 // pred_region
      %s306 = ssub.s32 %s16, 1
      // Predicated region
      $region13: #{_lambda_.3} parent=11 // pred_check
        %p307 = pneg %p149
      $region14: #{_lambda_.3} parent=11 // pred_check_branch
        %309 = sbr.rel (%p307) target = $region16
      $region15: #{_lambda_.3} parent=11 // pred_region
        _
      $region16: #{_lambda_.3} parent=11 // pred_fallthru
        _
      // Predicated region
      $region17: #{_lambda_.3} parent=11 // pred_check
        %p310 = pneg %p170
      $region18: #{_lambda_.3} parent=11 // pred_check_branch
        %312 = sbr.rel (%p310) target = $region20
      $region19: #{_lambda_.3} parent=11 // pred_region
        _
      $region20: #{_lambda_.3} parent=11 // pred_fallthru
        _
      // Predicated region
      $region21: #{_lambda_.3} parent=11 // pred_check
        %p313 = pneg %p191
      $region22: #{_lambda_.3} parent=11 // pred_check_branch
        %315 = sbr.rel (%p313) target = $region24
      $region23: #{_lambda_.3} parent=11 // pred_region
        _
      $region24: #{_lambda_.3} parent=11 // pred_fallthru
        _
      // Predicated region
      $region25: #{_lambda_.3} parent=11 // pred_check
        %p316 = pneg %p212
      $region26: #{_lambda_.3} parent=11 // pred_check_branch
        %318 = sbr.rel (%p316) target = $region28
      $region27: #{_lambda_.3} parent=11 // pred_region
        _
      $region28: #{_lambda_.3} parent=11 // pred_fallthru
        _
    $region12: #{_lambda_.3} parent=5 // pred_fallthru
      _
    %p319 = scmp.lt.s32.totalorder %s16, 2
    // Predicated region
    $region29: #{_lambda_.3} parent=5 // pred_check
      %p320 = pneg %p319
    $region30: #{_lambda_.3} parent=5 // pred_check_branch
      %322 = sbr.rel (%p320) target = $region32
    $region31: #{_lambda_.3} parent=5 // pred_region
      // Predicated region
      $region33: #{_lambda_.3} parent=31 // pred_check
        %p323 = pneg %p50
      $region34: #{_lambda_.3} parent=31 // pred_check_branch
        %325 = sbr.rel (%p323) target = $region36
      $region35: #{_lambda_.3} parent=31 // pred_region
        %s326 = smul.u32 2, %s24
        %p327 = scmp.lt.s32.totalorder %s23, 1
        %s328 = scalar_select %p327, %s23, 1
        %p329 = scmp.lt.s32.totalorder %s326, 1
        %s330 = scalar_select %p329, %s326, 1
        %s331 = smul.addr %s328, 2
        %s332 = sadd.s32 %s330, %s331
        %s333 = smul.addr %s332, 8
        %s334 = scalar_lea.vmem %s0, %s333
        %s335 = smul.u32 2, %s24
      $region36: #{_lambda_.3} parent=31 // pred_fallthru
        _
      // Predicated region
      $region37: #{_lambda_.3} parent=31 // pred_check
        %p336 = pneg %p86
      $region38: #{_lambda_.3} parent=31 // pred_check_branch
        %338 = sbr.rel (%p336) target = $region40
      $region39: #{_lambda_.3} parent=31 // pred_region
        %s339 = smul.u32 %s24, 2
        %s340 = ssub.s32 %s339, 1
        %p341 = scmp.gt.s32.totalorder %s340, 0
        %s342 = scalar_select %p341, %s340, 0
        %p343 = scmp.lt.s32.totalorder %s23, 1
        %s344 = scalar_select %p343, %s23, 1
        %p345 = scmp.lt.s32.totalorder %s342, 1
        %s346 = scalar_select %p345, %s342, 1
        %s347 = smul.addr %s344, 2
        %s348 = sadd.s32 %s346, %s347
        %s349 = smul.addr %s348, 8
        %s350 = scalar_lea.vmem %s1, %s349
        %s351 = smul.u32 %s24, 2
        %s352 = ssub.s32 %s351, 1
        %p353 = scmp.gt.s32.totalorder %s352, 0
        %s354 = scalar_select %p353, %s352, 0
      $region40: #{_lambda_.3} parent=31 // pred_fallthru
        _
      // Predicated region
      $region41: #{_lambda_.3} parent=31 // pred_check
        %p355 = pneg %p122
      $region42: #{_lambda_.3} parent=31 // pred_check_branch
        %357 = sbr.rel (%p355) target = $region44
      $region43: #{_lambda_.3} parent=31 // pred_region
        %s358 = sadd.s32 %s24, 1
        %s359 = smul.u32 %s358, 2
        %p360 = scmp.lt.s32.totalorder %s359, 1
        %s361 = scalar_select %p360, %s359, 1
        %p362 = scmp.lt.s32.totalorder %s23, 1
        %s363 = scalar_select %p362, %s23, 1
        %p364 = scmp.lt.s32.totalorder %s361, 1
        %s365 = scalar_select %p364, %s361, 1
        %s366 = smul.addr %s363, 2
        %s367 = sadd.s32 %s365, %s366
        %s368 = smul.addr %s367, 8
        %s369 = scalar_lea.vmem %s2, %s368
        %s370 = sadd.s32 %s24, 1
        %s371 = smul.u32 %s370, 2
        %p372 = scmp.lt.s32.totalorder %s371, 1
        %s373 = scalar_select %p372, %s371, 1
      $region44: #{_lambda_.3} parent=31 // pred_fallthru
        _
    $region32: #{_lambda_.3} parent=5 // pred_fallthru
      _
    %p374 = scmp.le.s32.totalorder 1, %s16
    %p375 = scmp.lt.s32.totalorder %s16, 3
    %p376 = pnand %p374, %p375
    %p377 = pneg %p376
    // Predicated region
    $region45: #{_lambda_.3} parent=5 // pred_check
      _
    $region46: #{_lambda_.3} parent=5 // pred_check_branch
      %379 = sbr.rel (%p376) target = $region48
    $region47: #{_lambda_.3} parent=5 // pred_region
      %s380 = ssub.s32 %s16, 1
      %s381 = smul.u32 2, %s26
      %p382 = scmp.lt.s32.totalorder %s25, 1
      %s383 = scalar_select %p382, %s25, 1
      %p384 = scmp.lt.s32.totalorder %s381, 1
      %s385 = scalar_select %p384, %s381, 1
      %s386 = smul.addr %s383, 2
      %s387 = sadd.s32 %s385, %s386
      %s388 = smul.addr %s387, 8
      %s389 = scalar_lea.vmem %s0, %s388
      %p390 = pneg %p56
      %p391 = pneg %p53
      %s392 = smul.u32 %s26, 2
      %s393 = ssub.s32 %s392, 1
      %p394 = scmp.gt.s32.totalorder %s393, 0
      %s395 = scalar_select %p394, %s393, 0
      %p396 = scmp.lt.s32.totalorder %s25, 1
      %s397 = scalar_select %p396, %s25, 1
      %p398 = scmp.lt.s32.totalorder %s395, 1
      %s399 = scalar_select %p398, %s395, 1
      %s400 = smul.addr %s397, 2
      %s401 = sadd.s32 %s399, %s400
      %s402 = smul.addr %s401, 8
      %s403 = scalar_lea.vmem %s1, %s402
      %p404 = pneg %p92
      %p405 = pneg %p89
      %s406 = sadd.s32 %s26, 1
      %s407 = smul.u32 %s406, 2
      %p408 = scmp.lt.s32.totalorder %s407, 1
      %s409 = scalar_select %p408, %s407, 1
      %p410 = scmp.lt.s32.totalorder %s25, 1
      %s411 = scalar_select %p410, %s25, 1
      %p412 = scmp.lt.s32.totalorder %s409, 1
      %s413 = scalar_select %p412, %s409, 1
      %s414 = smul.addr %s411, 2
      %s415 = sadd.s32 %s413, %s414
      %s416 = smul.addr %s415, 8
      %s417 = scalar_lea.vmem %s2, %s416
      %p418 = pneg %p128
      %p419 = pneg %p125
      %p420 = pneg %p149
      %p421 = pneg %p146
      %p422 = pneg %p170
      %p423 = pneg %p167
      %p424 = pneg %p191
      %p425 = pneg %p188
      %p426 = pneg %p212
      %p427 = pneg %p209
      %p428 = pneg %p240
      %p429 = pneg %p237
      %s430 = smul.u32 2, %s26
      %p431 = scmp.lt.s32.totalorder %s25, 1
      %s432 = scalar_select %p431, %s25, 1
      %p433 = scmp.lt.s32.totalorder %s430, 1
      %s434 = scalar_select %p433, %s430, 1
      %s435 = smul.addr %s432, 2
      %s436 = sadd.s32 %s434, %s435
      %s437 = smul.addr %s436, 8
      %s438 = scalar_lea.vmem %s7, %s437
      %p439 = pneg %p266
      %p440 = pneg %p263
      %p441 = scmp.lt.s32.totalorder %s25, 1
      %s442 = scalar_select %p441, %s25, 1
      %s443 = scalar_lea.vmem %s8, %s442
      %p444 = pneg %p292
      %p445 = pneg %p289
      %p446 = scmp.lt.s32.totalorder %s25, 1
      %s447 = scalar_select %p446, %s25, 1
      %s448 = scalar_lea.vmem %s9, %s447
      %s449 = smul.u32 2, %s26
      %p450 = scmp.lt.s32.totalorder %s25, 1
      %s451 = scalar_select %p450, %s25, 1
      %p452 = scmp.lt.s32.totalorder %s449, 1
      %s453 = scalar_select %p452, %s449, 1
      %s454 = smul.addr %s451, 2
      %s455 = sadd.s32 %s453, %s454
      %s456 = smul.addr %s455, 8
      %s457 = scalar_lea.vmem %s0, %s456
      %s458 = smul.u32 2, %s26
      %s459 = smul.u32 %s26, 2
      %s460 = ssub.s32 %s459, 1
      %p461 = scmp.gt.s32.totalorder %s460, 0
      %s462 = scalar_select %p461, %s460, 0
      %p463 = scmp.lt.s32.totalorder %s25, 1
      %s464 = scalar_select %p463, %s25, 1
      %p465 = scmp.lt.s32.totalorder %s462, 1
      %s466 = scalar_select %p465, %s462, 1
      %s467 = smul.addr %s464, 2
      %s468 = sadd.s32 %s466, %s467
      %s469 = smul.addr %s468, 8
      %s470 = scalar_lea.vmem %s1, %s469
      %s471 = smul.u32 %s26, 2
      %s472 = ssub.s32 %s471, 1
      %p473 = scmp.gt.s32.totalorder %s472, 0
      %s474 = scalar_select %p473, %s472, 0
      %s475 = sadd.s32 %s26, 1
      %s476 = smul.u32 %s475, 2
      %p477 = scmp.lt.s32.totalorder %s476, 1
      %s478 = scalar_select %p477, %s476, 1
      %p479 = scmp.lt.s32.totalorder %s25, 1
      %s480 = scalar_select %p479, %s25, 1
      %p481 = scmp.lt.s32.totalorder %s478, 1
      %s482 = scalar_select %p481, %s478, 1
      %s483 = smul.addr %s480, 2
      %s484 = sadd.s32 %s482, %s483
      %s485 = smul.addr %s484, 8
      %s486 = scalar_lea.vmem %s2, %s485
      %s487 = sadd.s32 %s26, 1
      %s488 = smul.u32 %s487, 2
      %p489 = scmp.lt.s32.totalorder %s488, 1
      %s490 = scalar_select %p489, %s488, 1
      %s491 = smul.u32 2, %s26
      %p492 = scmp.lt.s32.totalorder %s25, 1
      %s493 = scalar_select %p492, %s25, 1
      %p494 = scmp.lt.s32.totalorder %s491, 1
      %s495 = scalar_select %p494, %s491, 1
      %s496 = smul.addr %s493, 2
      %s497 = sadd.s32 %s495, %s496
      %s498 = smul.addr %s497, 8
      %s499 = scalar_lea.vmem %s7, %s498
      %s500 = smul.u32 2, %s26
      %p501 = scmp.lt.s32.totalorder %s25, 1
      %s502 = scalar_select %p501, %s25, 1
      %s503 = scalar_lea.vmem %s8, %s502
      %p504 = scmp.lt.s32.totalorder %s25, 1
      %s505 = scalar_select %p504, %s25, 1
      %s506 = scalar_lea.vmem %s9, %s505
      %s507 = smul.u32 %s26, 16
      %v508 = vld [vmem:[%s5] sm:$0x1]
      %v509 = vld [vmem:[%s6] sm:$0x1]
      %v510 = vld [vmem:[%s470] sm:$0xff]
      %s511 = ssub.s32 %s507, 8
      %v513 = vperm.slane %v508, 0
      %v515 = vmul.f32 %v510, %v513
      %v517 = vperm.slane %v509, 0
      %v519 = vadd.f32 %v515, %v517
      %v520 = vlaneseq
      %v521 = vshrl.u32 %v520, 7
      %v522 = vstv %s511
      %v523 = vadd.s32 %v521, %v522
      %vm524 = vcmp.ge.s32.totalorder %v523, 0
      %vm525 = vcmp.lt.s32.totalorder %v523, 16
      %vm526 = vmand %vm524, %vm525
      %v527 = vsel %vm526, 1, 0
      %vm528 = vcmp.eq.s32.totalorder %v527, 1
      %v529 = vsel %vm528, %v519, 0.0
      %530 = vst [vmem:[#allocation2] sm:$0xff] %v529
      %v531 = vld [vmem:[%s457] sm:$0xff]
      %v532 = vld [vmem:[%s457 + $0x8] sm:$0xff]
      %v533 = vmul.f32 %v531, %v513
      %v534 = vmul.f32 %v532, %v513
      %v535 = vadd.f32 %v533, %v517
      %v536 = vadd.f32 %v534, %v517
      %v537 = vadd.s32 %v521, 8
      %v538 = vstv %s507
      %v539 = vadd.s32 %v521, %v538
      %v540 = vadd.s32 %v537, %v538
      %vm541 = vcmp.ge.s32.totalorder %v539, 0
      %vm542 = vcmp.ge.s32.totalorder %v540, 0
      %vm543 = vcmp.lt.s32.totalorder %v539, 16
      %vm544 = vcmp.lt.s32.totalorder %v540, 16
      %vm545 = vmand %vm541, %vm543
      %vm546 = vmand %vm542, %vm544
      %v547 = vsel %vm545, 1, 0
      %v548 = vsel %vm546, 1, 0
      %vm549 = vcmp.eq.s32.totalorder %v547, 1
      %vm550 = vcmp.eq.s32.totalorder %v548, 1
      %v551 = vsel %vm549, %v535, 0.0
      %v552 = vsel %vm550, %v536, 0.0
      %553 = vst [vmem:[#allocation2 + $0x8] sm:$0xff] %v551
      %554 = vst [vmem:[#allocation2 + $0x10] sm:$0xff] %v552
      %v555 = vld [vmem:[%s486] sm:$0xff]
      %s556 = sadd.s32 %s507, 16
      %v557 = vmul.f32 %v555, %v513
      %v558 = vadd.f32 %v557, %v517
      %v559 = vstv %s556
      %v560 = vadd.s32 %v521, %v559
      %vm561 = vcmp.ge.s32.totalorder %v560, 0
      %vm562 = vcmp.lt.s32.totalorder %v560, 16
      %vm563 = vmand %vm561, %vm562
      %v564 = vsel %vm563, 1, 0
      %vm565 = vcmp.eq.s32.totalorder %v564, 1
      %v566 = vsel %vm565, %v558, 0.0
      %567 = vst [vmem:[#allocation2 + $0x18] sm:$0xff] %v566
      %v568 = vld [vmem:[#allocation2 + $0x7] sm:$0xff]
      %v569 = vld [vmem:[#allocation2 + $0xf] sm:$0xff]
      %v570 = vld [vmem:[%s3] sm:$0xff]
      %v571 = vld [vmem:[%s3 + $0x8] sm:$0xff]
      %v572 = vld [vmem:[%s3 + $0x10] sm:$0xff]
      %v573 = vld [vmem:[%s3 + $0x18] sm:$0xff]
      %v574 = vld [vmem:[%s3 + $0x20] sm:$0xff]
      %v575 = vld [vmem:[%s3 + $0x28] sm:$0xff]
      %v576 = vld [vmem:[%s3 + $0x30] sm:$0xff]
      %v577 = vld [vmem:[%s3 + $0x38] sm:$0xff]
      %v578 = vld [vmem:[%s3 + $0x40] sm:$0xff]
      %v579 = vld [vmem:[%s3 + $0x48] sm:$0xff]
      %v580 = vld [vmem:[%s3 + $0x50] sm:$0xff]
      %v581 = vld [vmem:[%s3 + $0x58] sm:$0xff]
      %v582 = vld [vmem:[%s3 + $0x60] sm:$0xff]
      %v583 = vld [vmem:[%s3 + $0x68] sm:$0xff]
      %v584 = vld [vmem:[%s3 + $0x70] sm:$0xff]
      %v585 = vld [vmem:[%s3 + $0x78] sm:$0xff]
      %v586 = vld [vmem:[#allocation2 + $0x8] sm:$0xff]
      %v587 = vld [vmem:[#allocation2 + $0x10] sm:$0xff]
      %v588 = vld [vmem:[%s3 + $0x80] sm:$0xff]
      %v589 = vld [vmem:[%s3 + $0x88] sm:$0xff]
      %v590 = vld [vmem:[%s3 + $0x90] sm:$0xff]
      %v591 = vld [vmem:[%s3 + $0x98] sm:$0xff]
      %v592 = vld [vmem:[%s3 + $0xa0] sm:$0xff]
      %v593 = vld [vmem:[%s3 + $0xa8] sm:$0xff]
      %v594 = vld [vmem:[%s3 + $0xb0] sm:$0xff]
      %v595 = vld [vmem:[%s3 + $0xb8] sm:$0xff]
      %v596 = vld [vmem:[%s3 + $0xc0] sm:$0xff]
      %v597 = vld [vmem:[%s3 + $0xc8] sm:$0xff]
      %v598 = vld [vmem:[%s3 + $0xd0] sm:$0xff]
      %v599 = vld [vmem:[%s3 + $0xd8] sm:$0xff]
      %v600 = vld [vmem:[%s3 + $0xe0] sm:$0xff]
      %v601 = vld [vmem:[%s3 + $0xe8] sm:$0xff]
      %v602 = vld [vmem:[%s3 + $0xf0] sm:$0xff]
      %v603 = vld [vmem:[%s3 + $0xf8] sm:$0xff]
      %604 = vmatpush.msra.mxu0 %v603
      %605 = vmatpush.msra.mxu0 %v602
      %606 = vmatpush.msra.mxu0 %v601
      %607 = vmatpush.msra.mxu0 %v600
      %608 = vmatpush.msra.mxu0 %v599
      %609 = vmatpush.msra.mxu0 %v598
      %610 = vmatpush.msra.mxu0 %v597
      %611 = vmatpush.msra.mxu0 %v596
      %612 = vmatpush.msra.mxu0 %v595
      %613 = vmatpush.msra.mxu0 %v594
      %614 = vmatpush.msra.mxu0 %v593
      %615 = vmatpush.msra.mxu0 %v592
      %616 = vmatpush.msra.mxu0 %v591
      %617 = vmatpush.msra.mxu0 %v590
      %618 = vmatpush.msra.mxu0 %v589
      %619 = vmatpush.msra.mxu0 %v588
      %620 = vmatmul.f32.gmra.mxu0 %v586
      %v621 = vpop.f32.mrf.mxu0
      %v622 = vadd.f32 0.0, %v621
      %623 = vmatmul.f32.gmra.mxu0 %v587
      %v624 = vpop.f32.mrf.mxu0
      %v625 = vadd.f32 0.0, %v624
      %626 = vdwg.mxu0
      %627 = vmatpush.msra.mxu0 %v585
      %628 = vmatpush.msra.mxu0 %v584
      %629 = vmatpush.msra.mxu0 %v583
      %630 = vmatpush.msra.mxu0 %v582
      %631 = vmatpush.msra.mxu0 %v581
      %632 = vmatpush.msra.mxu0 %v580
      %633 = vmatpush.msra.mxu0 %v579
      %634 = vmatpush.msra.mxu0 %v578
      %635 = vmatpush.msra.mxu0 %v577
      %636 = vmatpush.msra.mxu0 %v576
      %637 = vmatpush.msra.mxu0 %v575
      %638 = vmatpush.msra.mxu0 %v574
      %639 = vmatpush.msra.mxu0 %v573
      %640 = vmatpush.msra.mxu0 %v572
      %641 = vmatpush.msra.mxu0 %v571
      %642 = vmatpush.msra.mxu0 %v570
      %643 = vmatmul.f32.gmra.mxu0 %v568
      %v644 = vpop.f32.mrf.mxu0
      %v645 = vadd.f32 %v622, %v644
      %646 = vmatmul.f32.gmra.mxu0 %v569
      %v647 = vpop.f32.mrf.mxu0
      %v648 = vadd.f32 %v625, %v647
      %649 = vdwg.mxu0
      %v650 = vld [vmem:[#allocation2 + $0x9] sm:$0xff]
      %v651 = vld [vmem:[#allocation2 + $0x11] sm:$0xff]
      %v652 = vld [vmem:[%s3 + $0x100] sm:$0xff]
      %v653 = vld [vmem:[%s3 + $0x108] sm:$0xff]
      %v654 = vld [vmem:[%s3 + $0x110] sm:$0xff]
      %v655 = vld [vmem:[%s3 + $0x118] sm:$0xff]
      %v656 = vld [vmem:[%s3 + $0x120] sm:$0xff]
      %v657 = vld [vmem:[%s3 + $0x128] sm:$0xff]
      %v658 = vld [vmem:[%s3 + $0x130] sm:$0xff]
      %v659 = vld [vmem:[%s3 + $0x138] sm:$0xff]
      %v660 = vld [vmem:[%s3 + $0x140] sm:$0xff]
      %v661 = vld [vmem:[%s3 + $0x148] sm:$0xff]
      %v662 = vld [vmem:[%s3 + $0x150] sm:$0xff]
      %v663 = vld [vmem:[%s3 + $0x158] sm:$0xff]
      %v664 = vld [vmem:[%s3 + $0x160] sm:$0xff]
      %v665 = vld [vmem:[%s3 + $0x168] sm:$0xff]
      %v666 = vld [vmem:[%s3 + $0x170] sm:$0xff]
      %v667 = vld [vmem:[%s3 + $0x178] sm:$0xff]
      %668 = vmatpush.msra.mxu0 %v667
      %669 = vmatpush.msra.mxu0 %v666
      %670 = vmatpush.msra.mxu0 %v665
      %671 = vmatpush.msra.mxu0 %v664
      %672 = vmatpush.msra.mxu0 %v663
      %673 = vmatpush.msra.mxu0 %v662
      %674 = vmatpush.msra.mxu0 %v661
      %675 = vmatpush.msra.mxu0 %v660
      %676 = vmatpush.msra.mxu0 %v659
      %677 = vmatpush.msra.mxu0 %v658
      %678 = vmatpush.msra.mxu0 %v657
      %679 = vmatpush.msra.mxu0 %v656
      %680 = vmatpush.msra.mxu0 %v655
      %681 = vmatpush.msra.mxu0 %v654
      %682 = vmatpush.msra.mxu0 %v653
      %683 = vmatpush.msra.mxu0 %v652
      %684 = vmatmul.f32.gmra.mxu0 %v650
      %v685 = vpop.f32.mrf.mxu0
      %v686 = vadd.f32 0.0, %v685
      %687 = vmatmul.f32.gmra.mxu0 %v651
      %v688 = vpop.f32.mrf.mxu0
      %v689 = vadd.f32 0.0, %v688
      %690 = vdwg.mxu0
      %v691 = vadd.f32 %v645, %v686
      %v692 = vadd.f32 %v648, %v689
      %v693 = vld [vmem:[%s4] sm:$0x1]
      %v695 = vperm.slane %v693, 0
      %v697 = vadd.f32 %v691, %v695
      %v698 = vadd.f32 %v692, %v695
      %699 = vst [vmem:[%s499] sm:$0xff] %v697
      %700 = vst [vmem:[%s499 + $0x8] sm:$0xff] %v698
      %v701 = vsel %vm543, 1, 0
      %v702 = vsel %vm544, 1, 0
      %vm703 = vcmp.eq.s32.totalorder %v701, 1
      %vm704 = vcmp.eq.s32.totalorder %v702, 1
      %v705 = vsel %vm703, %v697, 0.0
      %v706 = vsel %vm704, %v698, 0.0
      %p707 = scmp.eq.s32.totalorder %s26, 0
      // Predicated region
      $region49: #{_lambda_.3} parent=47 // pred_check
        %p708 = pneg %p707
      $region50: #{_lambda_.3} parent=47 // pred_check_branch
        %710 = sbr.rel (%p708) target = $region52
      $region51: #{_lambda_.3} parent=47 // pred_region
        %711 = vst [vmem:[%s503] sm:$0x1] 0.0
        %712 = vst [vmem:[%s506] sm:$0x1] 0.0
      $region52: #{_lambda_.3} parent=47 // pred_fallthru
        _
      %v713 = vld [vmem:[%s503] sm:$0x1]
      %v714 = vadd.f32 %v705, %v706
      %v715 = vrot.slane %v714, 4
      %v716 = vadd.f32 %v714, %v715
      %v717 = vrot.slane %v716, 2
      %v718 = vadd.f32 %v716, %v717
      %v719 = vrot.slane %v718, 1
      %v720 = vadd.f32 %v718, %v719
      %v721 = vadd.f32 %v713, %v720
      %722 = vst [vmem:[%s503] sm:$0x1] %v721
      %v723 = vld [vmem:[%s506] sm:$0x1]
      %v724 = vmul.f32 %v705, %v705
      %v725 = vmul.f32 %v706, %v706
      %v726 = vadd.f32 %v724, %v725
      %v727 = vrot.slane %v726, 4
      %v728 = vadd.f32 %v726, %v727
      %v729 = vrot.slane %v728, 2
      %v730 = vadd.f32 %v728, %v729
      %v731 = vrot.slane %v730, 1
      %v732 = vadd.f32 %v730, %v731
      %v733 = vadd.f32 %v723, %v732
      %734 = vst [vmem:[%s506] sm:$0x1] %v733
      %s735 = smul.u32 2, %s26
      %p736 = scmp.lt.s32.totalorder %s25, 1
      %s737 = scalar_select %p736, %s25, 1
      %p738 = scmp.lt.s32.totalorder %s735, 1
      %s739 = scalar_select %p738, %s735, 1
      %s740 = smul.addr %s737, 2
      %s741 = sadd.s32 %s739, %s740
      %s742 = smul.addr %s741, 8
      %s743 = scalar_lea.vmem %s7, %s742
      %p744 = scmp.lt.s32.totalorder %s25, 1
      %s745 = scalar_select %p744, %s25, 1
      %s746 = scalar_lea.vmem %s8, %s745
      %p747 = scmp.lt.s32.totalorder %s25, 1
      %s748 = scalar_select %p747, %s25, 1
      %s749 = scalar_lea.vmem %s9, %s748
      // Predicated region
      $region53: #{_lambda_.3} parent=47 // pred_check
        %p750 = pneg %p237
      $region54: #{_lambda_.3} parent=47 // pred_check_branch
        %752 = sbr.rel (%p750) target = $region56
      $region55: #{_lambda_.3} parent=47 // pred_region
        %s753 = smul.u32 2, %s26
      $region56: #{_lambda_.3} parent=47 // pred_fallthru
        _
      // Predicated region
      $region57: #{_lambda_.3} parent=47 // pred_check
        %p754 = pneg %p263
      $region58: #{_lambda_.3} parent=47 // pred_check_branch
        %756 = sbr.rel (%p754) target = $region60
      $region59: #{_lambda_.3} parent=47 // pred_region
        _
      $region60: #{_lambda_.3} parent=47 // pred_fallthru
        _
      // Predicated region
      $region61: #{_lambda_.3} parent=47 // pred_check
        %p757 = pneg %p289
      $region62: #{_lambda_.3} parent=47 // pred_check_branch
        %759 = sbr.rel (%p757) target = $region64
      $region63: #{_lambda_.3} parent=47 // pred_region
        _
      $region64: #{_lambda_.3} parent=47 // pred_fallthru
        _
    $region48: #{_lambda_.3} parent=5 // pred_fallthru
      _
    %p760 = scmp.le.s32.totalorder 2, %s16
    // Predicated region
    $region65: #{_lambda_.3} parent=5 // pred_check
      %p761 = pneg %p760
    $region66: #{_lambda_.3} parent=5 // pred_check_branch
      %763 = sbr.rel (%p761) target = $region68
    $region67: #{_lambda_.3} parent=5 // pred_region
      %s764 = ssub.s32 %s16, 2
      // Predicated region
      $region69: #{_lambda_.3} parent=67 // pred_check
        %p765 = pneg %p243
      $region70: #{_lambda_.3} parent=67 // pred_check_branch
        %767 = sbr.rel (%p765) target = $region72
      $region71: #{_lambda_.3} parent=67 // pred_region
        %s768 = smul.u32 2, %s28
        %p769 = scmp.lt.s32.totalorder %s27, 1
        %s770 = scalar_select %p769, %s27, 1
        %p771 = scmp.lt.s32.totalorder %s768, 1
        %s772 = scalar_select %p771, %s768, 1
        %s773 = smul.addr %s770, 2
        %s774 = sadd.s32 %s772, %s773
        %s775 = smul.addr %s774, 8
        %s776 = scalar_lea.vmem %s7, %s775
      $region72: #{_lambda_.3} parent=67 // pred_fallthru
        _
      // Predicated region
      $region73: #{_lambda_.3} parent=67 // pred_check
        %p777 = pneg %p269
      $region74: #{_lambda_.3} parent=67 // pred_check_branch
        %779 = sbr.rel (%p777) target = $region76
      $region75: #{_lambda_.3} parent=67 // pred_region
        %p780 = scmp.lt.s32.totalorder %s27, 1
        %s781 = scalar_select %p780, %s27, 1
        %s782 = scalar_lea.vmem %s8, %s781
      $region76: #{_lambda_.3} parent=67 // pred_fallthru
        _
      // Predicated region
      $region77: #{_lambda_.3} parent=67 // pred_check
        %p783 = pneg %p295
      $region78: #{_lambda_.3} parent=67 // pred_check_branch
        %785 = sbr.rel (%p783) target = $region80
      $region79: #{_lambda_.3} parent=67 // pred_region
        %p786 = scmp.lt.s32.totalorder %s27, 1
        %s787 = scalar_select %p786, %s27, 1
        %s788 = scalar_lea.vmem %s9, %s787
      $region80: #{_lambda_.3} parent=67 // pred_fallthru
        _
    $region68: #{_lambda_.3} parent=5 // pred_fallthru
      _
  $region6: #{_lambda_.3} parent=0 // loop_footer
    %s20 = sadd.s32 1, %s16
  $region7: #{_lambda_.3} parent=0 // loop_footer_branch
    %15 = sbr.rel target = $region3
  $region8: #{_lambda_.3} parent=0 // loop_exit
    _

// kernel: _lambda_.4
$region0: #{_lambda_.4}
  #allocation0 [shape = 'u32[]', space=smem, size = 0x4, offset = 0x4, fixed_abs, tag = 'smem constant byte address 0x4 - core index']
  #allocation1 [shape = 'u32[72,128]{1,0:T(1,128)}', space=vmem, size = 0x9000, scoped, tag = 'internal scratch']
  #allocation2 [shape = 'f32[32,128]{1,0:T(8,128)}', space=vmem, size = 0x4000, scoped, tag = 'scratch operand']
  %s0 = inlined_call_operand.vmem [shape: f32[2,16,128], index: 0, kind: input, shape index: {}, may-alias: {0,1,2}]
  %s1 = inlined_call_operand.vmem [shape: f32[2,16,128], index: 1, kind: input, shape index: {}, may-alias: {0,1,2}]
  %s2 = inlined_call_operand.vmem [shape: f32[2,16,128], index: 2, kind: input, shape index: {}, may-alias: {0,1,2}]
  %s3 = inlined_call_operand.vmem [shape: f32[384,128], index: 3, kind: input, shape index: {}]
  %s4 = inlined_call_operand.vmem [shape: f32[1,128], index: 4, kind: input, shape index: {}]
  %s5 = inlined_call_operand.vmem [shape: f32[1,128], index: 5, kind: input, shape index: {}]
  %s6 = inlined_call_operand.vmem [shape: f32[1,128], index: 6, kind: input, shape index: {}]
  %s7 = inlined_call_operand.vmem [shape: f32[2,16,128], index: 7, kind: output, shape index: {0}]
  %s8 = inlined_call_operand.vmem [shape: f32[2,1,128], index: 8, kind: output, shape index: {1}]
  %s9 = inlined_call_operand.vmem [shape: f32[2,1,128], index: 9, kind: output, shape index: {2}]
  %10 = xla_tuple %s7, %s8, %s9
  %s11 = sld [smem:[#allocation0]]
  $region81: #{_lambda_.4} parent=0
    _
  %s13 = ssub.s32 1, %s11
  %s14 = scalar_select 0, %s13, %s11
  loop: start=0, step=1, limit=4
  $region2: #{_lambda_.4} parent=0 // loop_pre_header
    _
  $region3: #{_lambda_.4} parent=0 // loop_header
    %s16 = sphi 0, %s20
    %p17 = scmp.ge.s32.totalorder %s16, 4
    %s23 = sphi 0, %s35
    %s24 = sphi 0, %s31
    %s25 = sphi 0, %s23
    %s26 = sphi 0, %s24
    %s27 = sphi 0, %s25
    %s28 = sphi 0, %s26
    %s40 = sphi 0, %s42
    %s43 = sphi 0, %s40
    %s44 = sphi 0, %s43
    %s60 = sphi 0, %s44
    %s76 = sphi 0, %s78
    %s79 = sphi 0, %s76
    %s80 = sphi 0, %s79
    %s96 = sphi 0, %s80
    %s112 = sphi 0, %s114
    %s115 = sphi 0, %s112
    %s116 = sphi 0, %s115
    %s132 = sphi 0, %s116
    %s136 = sphi 0, %s136
    %s138 = sphi 0, %s136
    %s139 = sphi 0, %s138
    %s153 = sphi 0, %s139
    %s157 = sphi 0, %s157
    %s159 = sphi 0, %s157
    %s160 = sphi 0, %s159
    %s174 = sphi 0, %s160
    %s178 = sphi 0, %s178
    %s180 = sphi 0, %s178
    %s181 = sphi 0, %s180
    %s195 = sphi 0, %s181
    %s199 = sphi 0, %s199
    %s201 = sphi 0, %s199
    %s202 = sphi 0, %s201
    %s216 = sphi 0, %s202
    %s224 = sphi 0, %s226
    %s227 = sphi 0, %s224
    %s228 = sphi 0, %s227
    %s244 = sphi 0, %s228
    %s250 = sphi 0, %s252
    %s253 = sphi 0, %s250
    %s254 = sphi 0, %s253
    %s270 = sphi 0, %s254
    %s276 = sphi 0, %s278
    %s279 = sphi 0, %s276
    %s280 = sphi 0, %s279
    %s296 = sphi 0, %s280
  $region4: #{_lambda_.4} parent=0 // loop_header_branch
    %19 = sbr.rel (%p17) target = $region8
  $region5: #{_lambda_.4} parent=0 // loop_body
    %s21 = ssub.s32 %s16, 1
    %s22 = ssub.s32 %s16, 2
    %s29 = sadd.s32 1, %s24
    %p30 = scmp.ge.s32.totalorder %s29, 1
    %s31 = scalar_select %p30, 0, %s29
    %s32 = sadd.s32 1, %s23
    %s33 = scalar_select %p30, %s32, %s23
    %p34 = scmp.ge.s32.totalorder %s33, 2
    %s35 = scalar_select %p34, 0, %s33
    %s36 = ssub.s32 %s23, %s35
    %s37 = ssub.s32 %s24, %s31
    %s38 = sor.u32 %s36, %s37
    %p39 = scmp.eq.s32.totalorder %s38, 0
    %s41 = sadd.s32 %s40, 1
    %s42 = scalar_select %p39, %s40, %s41
    %p45 = pneg %p39
    %p46 = scmp.eq.s32.totalorder %s16, 1
    %p47 = por %p45, %p46
    %p48 = scmp.ne.s32.totalorder %s40, %s43
    %p49 = scmp.eq.s32.totalorder %s16, 0
    %p50 = por %p48, %p49
    %p51 = scmp.ne.s32.totalorder %s40, %s43
    %p52 = scmp.eq.s32.totalorder %s21, 1
    %p53 = por %p51, %p52
    %p54 = scmp.ne.s32.totalorder %s43, %s44
    %p55 = scmp.eq.s32.totalorder %s21, 0
    %p56 = por %p54, %p55
    %p57 = scmp.ne.s32.totalorder %s43, %s44
    %p58 = scmp.eq.s32.totalorder %s22, 1
    %p59 = por %p57, %p58
    %p61 = scmp.ne.s32.totalorder %s44, %s60
    %p62 = scmp.eq.s32.totalorder %s22, 0
    %p63 = por %p61, %p62
    %s64 = smul.u32 %s24, 2
    %s65 = ssub.s32 %s64, 1
    %p66 = scmp.gt.s32.totalorder %s65, 0
    %s67 = scalar_select %p66, %s65, 0
    %s68 = smul.u32 %s31, 2
    %s69 = ssub.s32 %s68, 1
    %p70 = scmp.gt.s32.totalorder %s69, 0
    %s71 = scalar_select %p70, %s69, 0
    %s72 = ssub.s32 %s23, %s35
    %s73 = ssub.s32 %s67, %s71
    %s74 = sor.u32 %s72, %s73
    %p75 = scmp.eq.s32.totalorder %s74, 0
    %s77 = sadd.s32 %s76, 1
    %s78 = scalar_select %p75, %s76, %s77
    %p81 = pneg %p75
    %p82 = scmp.eq.s32.totalorder %s16, 1
    %p83 = por %p81, %p82
    %p84 = scmp.ne.s32.totalorder %s76, %s79
    %p85 = scmp.eq.s32.totalorder %s16, 0
    %p86 = por %p84, %p85
    %p87 = scmp.ne.s32.totalorder %s76, %s79
    %p88 = scmp.eq.s32.totalorder %s21, 1
    %p89 = por %p87, %p88
    %p90 = scmp.ne.s32.totalorder %s79, %s80
    %p91 = scmp.eq.s32.totalorder %s21, 0
    %p92 = por %p90, %p91
    %p93 = scmp.ne.s32.totalorder %s79, %s80
    %p94 = scmp.eq.s32.totalorder %s22, 1
    %p95 = por %p93, %p94
    %p97 = scmp.ne.s32.totalorder %s80, %s96
    %p98 = scmp.eq.s32.totalorder %s22, 0
    %p99 = por %p97, %p98
    %s100 = sadd.s32 %s24, 1
    %s101 = smul.u32 %s100, 2
    %p102 = scmp.lt.s32.totalorder %s101, 1
    %s103 = scalar_select %p102, %s101, 1
    %s104 = sadd.s32 %s31, 1
    %s105 = smul.u32 %s104, 2
    %p106 = scmp.lt.s32.totalorder %s105, 1
    %s107 = scalar_select %p106, %s105, 1
    %s108 = ssub.s32 %s23, %s35
    %s109 = ssub.s32 %s103, %s107
    %s110 = sor.u32 %s108, %s109
    %p111 = scmp.eq.s32.totalorder %s110, 0
    %s113 = sadd.s32 %s112, 1
    %s114 = scalar_select %p111, %s112, %s113
    %p117 = pneg %p111
    %p118 = scmp.eq.s32.totalorder %s16, 1
    %p119 = por %p117, %p118
    %p120 = scmp.ne.s32.totalorder %s112, %s115
    %p121 = scmp.eq.s32.totalorder %s16, 0
    %p122 = por %p120, %p121
    %p123 = scmp.ne.s32.totalorder %s112, %s115
    %p124 = scmp.eq.s32.totalorder %s21, 1
    %p125 = por %p123, %p124
    %p126 = scmp.ne.s32.totalorder %s115, %s116
    %p127 = scmp.eq.s32.totalorder %s21, 0
    %p128 = por %p126, %p127
    %p129 = scmp.ne.s32.totalorder %s115, %s116
    %p130 = scmp.eq.s32.totalorder %s22, 1
    %p131 = por %p129, %p130
    %p133 = scmp.ne.s32.totalorder %s116, %s132
    %p134 = scmp.eq.s32.totalorder %s22, 0
    %p135 = por %p133, %p134
    %s137 = sadd.s32 %s136, 1
    %p140 = scmp.eq.s32.totalorder %s16, 1
    %p141 = scmp.ne.s32.totalorder %s136, %s138
    %p142 = scmp.eq.s32.totalorder %s16, 0
    %p143 = por %p141, %p142
    %p144 = scmp.ne.s32.totalorder %s136, %s138
    %p145 = scmp.eq.s32.totalorder %s21, 1
    %p146 = por %p144, %p145
    %p147 = scmp.ne.s32.totalorder %s138, %s139
    %p148 = scmp.eq.s32.totalorder %s21, 0
    %p149 = por %p147, %p148
    %p150 = scmp.ne.s32.totalorder %s138, %s139
    %p151 = scmp.eq.s32.totalorder %s22, 1
    %p152 = por %p150, %p151
    %p154 = scmp.ne.s32.totalorder %s139, %s153
    %p155 = scmp.eq.s32.totalorder %s22, 0
    %p156 = por %p154, %p155
    %s158 = sadd.s32 %s157, 1
    %p161 = scmp.eq.s32.totalorder %s16, 1
    %p162 = scmp.ne.s32.totalorder %s157, %s159
    %p163 = scmp.eq.s32.totalorder %s16, 0
    %p164 = por %p162, %p163
    %p165 = scmp.ne.s32.totalorder %s157, %s159
    %p166 = scmp.eq.s32.totalorder %s21, 1
    %p167 = por %p165, %p166
    %p168 = scmp.ne.s32.totalorder %s159, %s160
    %p169 = scmp.eq.s32.totalorder %s21, 0
    %p170 = por %p168, %p169
    %p171 = scmp.ne.s32.totalorder %s159, %s160
    %p172 = scmp.eq.s32.totalorder %s22, 1
    %p173 = por %p171, %p172
    %p175 = scmp.ne.s32.totalorder %s160, %s174
    %p176 = scmp.eq.s32.totalorder %s22, 0
    %p177 = por %p175, %p176
    %s179 = sadd.s32 %s178, 1
    %p182 = scmp.eq.s32.totalorder %s16, 1
    %p183 = scmp.ne.s32.totalorder %s178, %s180
    %p184 = scmp.eq.s32.totalorder %s16, 0
    %p185 = por %p183, %p184
    %p186 = scmp.ne.s32.totalorder %s178, %s180
    %p187 = scmp.eq.s32.totalorder %s21, 1
    %p188 = por %p186, %p187
    %p189 = scmp.ne.s32.totalorder %s180, %s181
    %p190 = scmp.eq.s32.totalorder %s21, 0
    %p191 = por %p189, %p190
    %p192 = scmp.ne.s32.totalorder %s180, %s181
    %p193 = scmp.eq.s32.totalorder %s22, 1
    %p194 = por %p192, %p193
    %p196 = scmp.ne.s32.totalorder %s181, %s195
    %p197 = scmp.eq.s32.totalorder %s22, 0
    %p198 = por %p196, %p197
    %s200 = sadd.s32 %s199, 1
    %p203 = scmp.eq.s32.totalorder %s16, 1
    %p204 = scmp.ne.s32.totalorder %s199, %s201
    %p205 = scmp.eq.s32.totalorder %s16, 0
    %p206 = por %p204, %p205
    %p207 = scmp.ne.s32.totalorder %s199, %s201
    %p208 = scmp.eq.s32.totalorder %s21, 1
    %p209 = por %p207, %p208
    %p210 = scmp.ne.s32.totalorder %s201, %s202
    %p211 = scmp.eq.s32.totalorder %s21, 0
    %p212 = por %p210, %p211
    %p213 = scmp.ne.s32.totalorder %s201, %s202
    %p214 = scmp.eq.s32.totalorder %s22, 1
    %p215 = por %p213, %p214
    %p217 = scmp.ne.s32.totalorder %s202, %s216
    %p218 = scmp.eq.s32.totalorder %s22, 0
    %p219 = por %p217, %p218
    %s220 = ssub.s32 %s23, %s35
    %s221 = ssub.s32 %s24, %s31
    %s222 = sor.u32 %s220, %s221
    %p223 = scmp.eq.s32.totalorder %s222, 0
    %s225 = sadd.s32 %s224, 1
    %s226 = scalar_select %p223, %s224, %s225
    %p229 = pneg %p223
    %p230 = scmp.eq.s32.totalorder %s16, 1
    %p231 = por %p229, %p230
    %p232 = scmp.ne.s32.totalorder %s224, %s227
    %p233 = scmp.eq.s32.totalorder %s16, 0
    %p234 = por %p232, %p233
    %p235 = scmp.ne.s32.totalorder %s224, %s227
    %p236 = scmp.eq.s32.totalorder %s21, 1
    %p237 = por %p235, %p236
    %p238 = scmp.ne.s32.totalorder %s227, %s228
    %p239 = scmp.eq.s32.totalorder %s21, 0
    %p240 = por %p238, %p239
    %p241 = scmp.ne.s32.totalorder %s227, %s228
    %p242 = scmp.eq.s32.totalorder %s22, 1
    %p243 = por %p241, %p242
    %p245 = scmp.ne.s32.totalorder %s228, %s244
    %p246 = scmp.eq.s32.totalorder %s22, 0
    %p247 = por %p245, %p246
    %s248 = ssub.s32 %s23, %s35
    %p249 = scmp.eq.s32.totalorder %s248, 0
    %s251 = sadd.s32 %s250, 1
    %s252 = scalar_select %p249, %s250, %s251
    %p255 = pneg %p249
    %p256 = scmp.eq.s32.totalorder %s16, 1
    %p257 = por %p255, %p256
    %p258 = scmp.ne.s32.totalorder %s250, %s253
    %p259 = scmp.eq.s32.totalorder %s16, 0
    %p260 = por %p258, %p259
    %p261 = scmp.ne.s32.totalorder %s250, %s253
    %p262 = scmp.eq.s32.totalorder %s21, 1
    %p263 = por %p261, %p262
    %p264 = scmp.ne.s32.totalorder %s253, %s254
    %p265 = scmp.eq.s32.totalorder %s21, 0
    %p266 = por %p264, %p265
    %p267 = scmp.ne.s32.totalorder %s253, %s254
    %p268 = scmp.eq.s32.totalorder %s22, 1
    %p269 = por %p267, %p268
    %p271 = scmp.ne.s32.totalorder %s254, %s270
    %p272 = scmp.eq.s32.totalorder %s22, 0
    %p273 = por %p271, %p272
    %s274 = ssub.s32 %s23, %s35
    %p275 = scmp.eq.s32.totalorder %s274, 0
    %s277 = sadd.s32 %s276, 1
    %s278 = scalar_select %p275, %s276, %s277
    %p281 = pneg %p275
    %p282 = scmp.eq.s32.totalorder %s16, 1
    %p283 = por %p281, %p282
    %p284 = scmp.ne.s32.totalorder %s276, %s279
    %p285 = scmp.eq.s32.totalorder %s16, 0
    %p286 = por %p284, %p285
    %p287 = scmp.ne.s32.totalorder %s276, %s279
    %p288 = scmp.eq.s32.totalorder %s21, 1
    %p289 = por %p287, %p288
    %p290 = scmp.ne.s32.totalorder %s279, %s280
    %p291 = scmp.eq.s32.totalorder %s21, 0
    %p292 = por %p290, %p291
    %p293 = scmp.ne.s32.totalorder %s279, %s280
    %p294 = scmp.eq.s32.totalorder %s22, 1
    %p295 = por %p293, %p294
    %p297 = scmp.ne.s32.totalorder %s280, %s296
    %p298 = scmp.eq.s32.totalorder %s22, 0
    %p299 = por %p297, %p298
    %p300 = scmp.le.s32.totalorder 1, %s16
    %p301 = scmp.lt.s32.totalorder %s16, 3
    %p302 = pnand %p300, %p301
    %p303 = pneg %p302
    // Predicated region
    $region9: #{_lambda_.4} parent=5 // pred_check
      _
    $region10: #{_lambda_.4} parent=5 // pred_check_branch
      %305 = sbr.rel (%p302) target = $region12
    $region11: #{_lambda_.4} parent=5 // pred_region
      %s306 = ssub.s32 %s16, 1
      // Predicated region
      $region13: #{_lambda_.4} parent=11 // pred_check
        %p307 = pneg %p149
      $region14: #{_lambda_.4} parent=11 // pred_check_branch
        %309 = sbr.rel (%p307) target = $region16
      $region15: #{_lambda_.4} parent=11 // pred_region
        _
      $region16: #{_lambda_.4} parent=11 // pred_fallthru
        _
      // Predicated region
      $region17: #{_lambda_.4} parent=11 // pred_check
        %p310 = pneg %p170
      $region18: #{_lambda_.4} parent=11 // pred_check_branch
        %312 = sbr.rel (%p310) target = $region20
      $region19: #{_lambda_.4} parent=11 // pred_region
        _
      $region20: #{_lambda_.4} parent=11 // pred_fallthru
        _
      // Predicated region
      $region21: #{_lambda_.4} parent=11 // pred_check
        %p313 = pneg %p191
      $region22: #{_lambda_.4} parent=11 // pred_check_branch
        %315 = sbr.rel (%p313) target = $region24
      $region23: #{_lambda_.4} parent=11 // pred_region
        _
      $region24: #{_lambda_.4} parent=11 // pred_fallthru
        _
      // Predicated region
      $region25: #{_lambda_.4} parent=11 // pred_check
        %p316 = pneg %p212
      $region26: #{_lambda_.4} parent=11 // pred_check_branch
        %318 = sbr.rel (%p316) target = $region28
      $region27: #{_lambda_.4} parent=11 // pred_region
        _
      $region28: #{_lambda_.4} parent=11 // pred_fallthru
        _
    $region12: #{_lambda_.4} parent=5 // pred_fallthru
      _
    %p319 = scmp.lt.s32.totalorder %s16, 2
    // Predicated region
    $region29: #{_lambda_.4} parent=5 // pred_check
      %p320 = pneg %p319
    $region30: #{_lambda_.4} parent=5 // pred_check_branch
      %322 = sbr.rel (%p320) target = $region32
    $region31: #{_lambda_.4} parent=5 // pred_region
      // Predicated region
      $region33: #{_lambda_.4} parent=31 // pred_check
        %p323 = pneg %p50
      $region34: #{_lambda_.4} parent=31 // pred_check_branch
        %325 = sbr.rel (%p323) target = $region36
      $region35: #{_lambda_.4} parent=31 // pred_region
        %s326 = smul.u32 2, %s24
        %p327 = scmp.lt.s32.totalorder %s23, 1
        %s328 = scalar_select %p327, %s23, 1
        %p329 = scmp.lt.s32.totalorder %s326, 1
        %s330 = scalar_select %p329, %s326, 1
        %s331 = smul.addr %s328, 2
        %s332 = sadd.s32 %s330, %s331
        %s333 = smul.addr %s332, 8
        %s334 = scalar_lea.vmem %s0, %s333
        %s335 = smul.u32 2, %s24
      $region36: #{_lambda_.4} parent=31 // pred_fallthru
        _
      // Predicated region
      $region37: #{_lambda_.4} parent=31 // pred_check
        %p336 = pneg %p86
      $region38: #{_lambda_.4} parent=31 // pred_check_branch
        %338 = sbr.rel (%p336) target = $region40
      $region39: #{_lambda_.4} parent=31 // pred_region
        %s339 = smul.u32 %s24, 2
        %s340 = ssub.s32 %s339, 1
        %p341 = scmp.gt.s32.totalorder %s340, 0
        %s342 = scalar_select %p341, %s340, 0
        %p343 = scmp.lt.s32.totalorder %s23, 1
        %s344 = scalar_select %p343, %s23, 1
        %p345 = scmp.lt.s32.totalorder %s342, 1
        %s346 = scalar_select %p345, %s342, 1
        %s347 = smul.addr %s344, 2
        %s348 = sadd.s32 %s346, %s347
        %s349 = smul.addr %s348, 8
        %s350 = scalar_lea.vmem %s1, %s349
        %s351 = smul.u32 %s24, 2
        %s352 = ssub.s32 %s351, 1
        %p353 = scmp.gt.s32.totalorder %s352, 0
        %s354 = scalar_select %p353, %s352, 0
      $region40: #{_lambda_.4} parent=31 // pred_fallthru
        _
      // Predicated region
      $region41: #{_lambda_.4} parent=31 // pred_check
        %p355 = pneg %p122
      $region42: #{_lambda_.4} parent=31 // pred_check_branch
        %357 = sbr.rel (%p355) target = $region44
      $region43: #{_lambda_.4} parent=31 // pred_region
        %s358 = sadd.s32 %s24, 1
        %s359 = smul.u32 %s358, 2
        %p360 = scmp.lt.s32.totalorder %s359, 1
        %s361 = scalar_select %p360, %s359, 1
        %p362 = scmp.lt.s32.totalorder %s23, 1
        %s363 = scalar_select %p362, %s23, 1
        %p364 = scmp.lt.s32.totalorder %s361, 1
        %s365 = scalar_select %p364, %s361, 1
        %s366 = smul.addr %s363, 2
        %s367 = sadd.s32 %s365, %s366
        %s368 = smul.addr %s367, 8
        %s369 = scalar_lea.vmem %s2, %s368
        %s370 = sadd.s32 %s24, 1
        %s371 = smul.u32 %s370, 2
        %p372 = scmp.lt.s32.totalorder %s371, 1
        %s373 = scalar_select %p372, %s371, 1
      $region44: #{_lambda_.4} parent=31 // pred_fallthru
        _
    $region32: #{_lambda_.4} parent=5 // pred_fallthru
      _
    %p374 = scmp.le.s32.totalorder 1, %s16
    %p375 = scmp.lt.s32.totalorder %s16, 3
    %p376 = pnand %p374, %p375
    %p377 = pneg %p376
    // Predicated region
    $region45: #{_lambda_.4} parent=5 // pred_check
      _
    $region46: #{_lambda_.4} parent=5 // pred_check_branch
      %379 = sbr.rel (%p376) target = $region48
    $region47: #{_lambda_.4} parent=5 // pred_region
      %s380 = ssub.s32 %s16, 1
      %s381 = smul.u32 2, %s26
      %p382 = scmp.lt.s32.totalorder %s25, 1
      %s383 = scalar_select %p382, %s25, 1
      %p384 = scmp.lt.s32.totalorder %s381, 1
      %s385 = scalar_select %p384, %s381, 1
      %s386 = smul.addr %s383, 2
      %s387 = sadd.s32 %s385, %s386
      %s388 = smul.addr %s387, 8
      %s389 = scalar_lea.vmem %s0, %s388
      %p390 = pneg %p56
      %p391 = pneg %p53
      %s392 = smul.u32 %s26, 2
      %s393 = ssub.s32 %s392, 1
      %p394 = scmp.gt.s32.totalorder %s393, 0
      %s395 = scalar_select %p394, %s393, 0
      %p396 = scmp.lt.s32.totalorder %s25, 1
      %s397 = scalar_select %p396, %s25, 1
      %p398 = scmp.lt.s32.totalorder %s395, 1
      %s399 = scalar_select %p398, %s395, 1
      %s400 = smul.addr %s397, 2
      %s401 = sadd.s32 %s399, %s400
      %s402 = smul.addr %s401, 8
      %s403 = scalar_lea.vmem %s1, %s402
      %p404 = pneg %p92
      %p405 = pneg %p89
      %s406 = sadd.s32 %s26, 1
      %s407 = smul.u32 %s406, 2
      %p408 = scmp.lt.s32.totalorder %s407, 1
      %s409 = scalar_select %p408, %s407, 1
      %p410 = scmp.lt.s32.totalorder %s25, 1
      %s411 = scalar_select %p410, %s25, 1
      %p412 = scmp.lt.s32.totalorder %s409, 1
      %s413 = scalar_select %p412, %s409, 1
      %s414 = smul.addr %s411, 2
      %s415 = sadd.s32 %s413, %s414
      %s416 = smul.addr %s415, 8
      %s417 = scalar_lea.vmem %s2, %s416
      %p418 = pneg %p128
      %p419 = pneg %p125
      %p420 = pneg %p149
      %p421 = pneg %p146
      %p422 = pneg %p170
      %p423 = pneg %p167
      %p424 = pneg %p191
      %p425 = pneg %p188
      %p426 = pneg %p212
      %p427 = pneg %p209
      %p428 = pneg %p240
      %p429 = pneg %p237
      %s430 = smul.u32 2, %s26
      %p431 = scmp.lt.s32.totalorder %s25, 1
      %s432 = scalar_select %p431, %s25, 1
      %p433 = scmp.lt.s32.totalorder %s430, 1
      %s434 = scalar_select %p433, %s430, 1
      %s435 = smul.addr %s432, 2
      %s436 = sadd.s32 %s434, %s435
      %s437 = smul.addr %s436, 8
      %s438 = scalar_lea.vmem %s7, %s437
      %p439 = pneg %p266
      %p440 = pneg %p263
      %p441 = scmp.lt.s32.totalorder %s25, 1
      %s442 = scalar_select %p441, %s25, 1
      %s443 = scalar_lea.vmem %s8, %s442
      %p444 = pneg %p292
      %p445 = pneg %p289
      %p446 = scmp.lt.s32.totalorder %s25, 1
      %s447 = scalar_select %p446, %s25, 1
      %s448 = scalar_lea.vmem %s9, %s447
      %s449 = smul.u32 2, %s26
      %p450 = scmp.lt.s32.totalorder %s25, 1
      %s451 = scalar_select %p450, %s25, 1
      %p452 = scmp.lt.s32.totalorder %s449, 1
      %s453 = scalar_select %p452, %s449, 1
      %s454 = smul.addr %s451, 2
      %s455 = sadd.s32 %s453, %s454
      %s456 = smul.addr %s455, 8
      %s457 = scalar_lea.vmem %s0, %s456
      %s458 = smul.u32 2, %s26
      %s459 = smul.u32 %s26, 2
      %s460 = ssub.s32 %s459, 1
      %p461 = scmp.gt.s32.totalorder %s460, 0
      %s462 = scalar_select %p461, %s460, 0
      %p463 = scmp.lt.s32.totalorder %s25, 1
      %s464 = scalar_select %p463, %s25, 1
      %p465 = scmp.lt.s32.totalorder %s462, 1
      %s466 = scalar_select %p465, %s462, 1
      %s467 = smul.addr %s464, 2
      %s468 = sadd.s32 %s466, %s467
      %s469 = smul.addr %s468, 8
      %s470 = scalar_lea.vmem %s1, %s469
      %s471 = smul.u32 %s26, 2
      %s472 = ssub.s32 %s471, 1
      %p473 = scmp.gt.s32.totalorder %s472, 0
      %s474 = scalar_select %p473, %s472, 0
      %s475 = sadd.s32 %s26, 1
      %s476 = smul.u32 %s475, 2
      %p477 = scmp.lt.s32.totalorder %s476, 1
      %s478 = scalar_select %p477, %s476, 1
      %p479 = scmp.lt.s32.totalorder %s25, 1
      %s480 = scalar_select %p479, %s25, 1
      %p481 = scmp.lt.s32.totalorder %s478, 1
      %s482 = scalar_select %p481, %s478, 1
      %s483 = smul.addr %s480, 2
      %s484 = sadd.s32 %s482, %s483
      %s485 = smul.addr %s484, 8
      %s486 = scalar_lea.vmem %s2, %s485
      %s487 = sadd.s32 %s26, 1
      %s488 = smul.u32 %s487, 2
      %p489 = scmp.lt.s32.totalorder %s488, 1
      %s490 = scalar_select %p489, %s488, 1
      %s491 = smul.u32 2, %s26
      %p492 = scmp.lt.s32.totalorder %s25, 1
      %s493 = scalar_select %p492, %s25, 1
      %p494 = scmp.lt.s32.totalorder %s491, 1
      %s495 = scalar_select %p494, %s491, 1
      %s496 = smul.addr %s493, 2
      %s497 = sadd.s32 %s495, %s496
      %s498 = smul.addr %s497, 8
      %s499 = scalar_lea.vmem %s7, %s498
      %s500 = smul.u32 2, %s26
      %p501 = scmp.lt.s32.totalorder %s25, 1
      %s502 = scalar_select %p501, %s25, 1
      %s503 = scalar_lea.vmem %s8, %s502
      %p504 = scmp.lt.s32.totalorder %s25, 1
      %s505 = scalar_select %p504, %s25, 1
      %s506 = scalar_lea.vmem %s9, %s505
      %s507 = smul.u32 %s26, 16
      %v508 = vld [vmem:[%s5] sm:$0x1]
      %v509 = vld [vmem:[%s6] sm:$0x1]
      %v510 = vld [vmem:[%s470] sm:$0xff]
      %s511 = ssub.s32 %s507, 8
      %v513 = vperm.slane %v508, 0
      %v515 = vmul.f32 %v510, %v513
      %v517 = vperm.slane %v509, 0
      %v519 = vadd.f32 %v515, %v517
      %v520 = vmax.f32 %v519, 0.0
      %v521 = vlaneseq
      %v522 = vshrl.u32 %v521, 7
      %v523 = vstv %s511
      %v524 = vadd.s32 %v522, %v523
      %vm525 = vcmp.ge.s32.totalorder %v524, 0
      %vm526 = vcmp.lt.s32.totalorder %v524, 16
      %vm527 = vmand %vm525, %vm526
      %v528 = vsel %vm527, 1, 0
      %vm529 = vcmp.eq.s32.totalorder %v528, 1
      %v530 = vsel %vm529, %v520, 0.0
      %531 = vst [vmem:[#allocation2] sm:$0xff] %v530
      %v532 = vld [vmem:[%s457] sm:$0xff]
      %v533 = vld [vmem:[%s457 + $0x8] sm:$0xff]
      %v534 = vmul.f32 %v532, %v513
      %v535 = vmul.f32 %v533, %v513
      %v536 = vadd.f32 %v534, %v517
      %v537 = vadd.f32 %v535, %v517
      %v538 = vmax.f32 %v536, 0.0
      %v539 = vmax.f32 %v537, 0.0
      %v540 = vadd.s32 %v522, 8
      %v541 = vstv %s507
      %v542 = vadd.s32 %v522, %v541
      %v543 = vadd.s32 %v540, %v541
      %vm544 = vcmp.ge.s32.totalorder %v542, 0
      %vm545 = vcmp.ge.s32.totalorder %v543, 0
      %vm546 = vcmp.lt.s32.totalorder %v542, 16
      %vm547 = vcmp.lt.s32.totalorder %v543, 16
      %vm548 = vmand %vm544, %vm546
      %vm549 = vmand %vm545, %vm547
      %v550 = vsel %vm548, 1, 0
      %v551 = vsel %vm549, 1, 0
      %vm552 = vcmp.eq.s32.totalorder %v550, 1
      %vm553 = vcmp.eq.s32.totalorder %v551, 1
      %v554 = vsel %vm552, %v538, 0.0
      %v555 = vsel %vm553, %v539, 0.0
      %556 = vst [vmem:[#allocation2 + $0x8] sm:$0xff] %v554
      %557 = vst [vmem:[#allocation2 + $0x10] sm:$0xff] %v555
      %v558 = vld [vmem:[%s486] sm:$0xff]
      %s559 = sadd.s32 %s507, 16
      %v560 = vmul.f32 %v558, %v513
      %v561 = vadd.f32 %v560, %v517
      %v562 = vmax.f32 %v561, 0.0
      %v563 = vstv %s559
      %v564 = vadd.s32 %v522, %v563
      %vm565 = vcmp.ge.s32.totalorder %v564, 0
      %vm566 = vcmp.lt.s32.totalorder %v564, 16
      %vm567 = vmand %vm565, %vm566
      %v568 = vsel %vm567, 1, 0
      %vm569 = vcmp.eq.s32.totalorder %v568, 1
      %v570 = vsel %vm569, %v562, 0.0
      %571 = vst [vmem:[#allocation2 + $0x18] sm:$0xff] %v570
      %v572 = vld [vmem:[#allocation2 + $0x7] sm:$0xff]
      %v573 = vld [vmem:[#allocation2 + $0xf] sm:$0xff]
      %v574 = vld [vmem:[%s3] sm:$0xff]
      %v575 = vld [vmem:[%s3 + $0x8] sm:$0xff]
      %v576 = vld [vmem:[%s3 + $0x10] sm:$0xff]
      %v577 = vld [vmem:[%s3 + $0x18] sm:$0xff]
      %v578 = vld [vmem:[%s3 + $0x20] sm:$0xff]
      %v579 = vld [vmem:[%s3 + $0x28] sm:$0xff]
      %v580 = vld [vmem:[%s3 + $0x30] sm:$0xff]
      %v581 = vld [vmem:[%s3 + $0x38] sm:$0xff]
      %v582 = vld [vmem:[%s3 + $0x40] sm:$0xff]
      %v583 = vld [vmem:[%s3 + $0x48] sm:$0xff]
      %v584 = vld [vmem:[%s3 + $0x50] sm:$0xff]
      %v585 = vld [vmem:[%s3 + $0x58] sm:$0xff]
      %v586 = vld [vmem:[%s3 + $0x60] sm:$0xff]
      %v587 = vld [vmem:[%s3 + $0x68] sm:$0xff]
      %v588 = vld [vmem:[%s3 + $0x70] sm:$0xff]
      %v589 = vld [vmem:[%s3 + $0x78] sm:$0xff]
      %v590 = vld [vmem:[#allocation2 + $0x8] sm:$0xff]
      %v591 = vld [vmem:[#allocation2 + $0x10] sm:$0xff]
      %v592 = vld [vmem:[%s3 + $0x80] sm:$0xff]
      %v593 = vld [vmem:[%s3 + $0x88] sm:$0xff]
      %v594 = vld [vmem:[%s3 + $0x90] sm:$0xff]
      %v595 = vld [vmem:[%s3 + $0x98] sm:$0xff]
      %v596 = vld [vmem:[%s3 + $0xa0] sm:$0xff]
      %v597 = vld [vmem:[%s3 + $0xa8] sm:$0xff]
      %v598 = vld [vmem:[%s3 + $0xb0] sm:$0xff]
      %v599 = vld [vmem:[%s3 + $0xb8] sm:$0xff]
      %v600 = vld [vmem:[%s3 + $0xc0] sm:$0xff]
      %v601 = vld [vmem:[%s3 + $0xc8] sm:$0xff]
      %v602 = vld [vmem:[%s3 + $0xd0] sm:$0xff]
      %v603 = vld [vmem:[%s3 + $0xd8] sm:$0xff]
      %v604 = vld [vmem:[%s3 + $0xe0] sm:$0xff]
      %v605 = vld [vmem:[%s3 + $0xe8] sm:$0xff]
      %v606 = vld [vmem:[%s3 + $0xf0] sm:$0xff]
      %v607 = vld [vmem:[%s3 + $0xf8] sm:$0xff]
      %608 = vmatpush.msra.mxu0 %v607
      %609 = vmatpush.msra.mxu0 %v606
      %610 = vmatpush.msra.mxu0 %v605
      %611 = vmatpush.msra.mxu0 %v604
      %612 = vmatpush.msra.mxu0 %v603
      %613 = vmatpush.msra.mxu0 %v602
      %614 = vmatpush.msra.mxu0 %v601
      %615 = vmatpush.msra.mxu0 %v600
      %616 = vmatpush.msra.mxu0 %v599
      %617 = vmatpush.msra.mxu0 %v598
      %618 = vmatpush.msra.mxu0 %v597
      %619 = vmatpush.msra.mxu0 %v596
      %620 = vmatpush.msra.mxu0 %v595
      %621 = vmatpush.msra.mxu0 %v594
      %622 = vmatpush.msra.mxu0 %v593
      %623 = vmatpush.msra.mxu0 %v592
      %624 = vmatmul.f32.gmra.mxu0 %v590
      %v625 = vpop.f32.mrf.mxu0
      %v626 = vadd.f32 0.0, %v625
      %627 = vmatmul.f32.gmra.mxu0 %v591
      %v628 = vpop.f32.mrf.mxu0
      %v629 = vadd.f32 0.0, %v628
      %630 = vdwg.mxu0
      %631 = vmatpush.msra.mxu0 %v589
      %632 = vmatpush.msra.mxu0 %v588
      %633 = vmatpush.msra.mxu0 %v587
      %634 = vmatpush.msra.mxu0 %v586
      %635 = vmatpush.msra.mxu0 %v585
      %636 = vmatpush.msra.mxu0 %v584
      %637 = vmatpush.msra.mxu0 %v583
      %638 = vmatpush.msra.mxu0 %v582
      %639 = vmatpush.msra.mxu0 %v581
      %640 = vmatpush.msra.mxu0 %v580
      %641 = vmatpush.msra.mxu0 %v579
      %642 = vmatpush.msra.mxu0 %v578
      %643 = vmatpush.msra.mxu0 %v577
      %644 = vmatpush.msra.mxu0 %v576
      %645 = vmatpush.msra.mxu0 %v575
      %646 = vmatpush.msra.mxu0 %v574
      %647 = vmatmul.f32.gmra.mxu0 %v572
      %v648 = vpop.f32.mrf.mxu0
      %v649 = vadd.f32 %v626, %v648
      %650 = vmatmul.f32.gmra.mxu0 %v573
      %v651 = vpop.f32.mrf.mxu0
      %v652 = vadd.f32 %v629, %v651
      %653 = vdwg.mxu0
      %v654 = vld [vmem:[#allocation2 + $0x9] sm:$0xff]
      %v655 = vld [vmem:[#allocation2 + $0x11] sm:$0xff]
      %v656 = vld [vmem:[%s3 + $0x100] sm:$0xff]
      %v657 = vld [vmem:[%s3 + $0x108] sm:$0xff]
      %v658 = vld [vmem:[%s3 + $0x110] sm:$0xff]
      %v659 = vld [vmem:[%s3 + $0x118] sm:$0xff]
      %v660 = vld [vmem:[%s3 + $0x120] sm:$0xff]
      %v661 = vld [vmem:[%s3 + $0x128] sm:$0xff]
      %v662 = vld [vmem:[%s3 + $0x130] sm:$0xff]
      %v663 = vld [vmem:[%s3 + $0x138] sm:$0xff]
      %v664 = vld [vmem:[%s3 + $0x140] sm:$0xff]
      %v665 = vld [vmem:[%s3 + $0x148] sm:$0xff]
      %v666 = vld [vmem:[%s3 + $0x150] sm:$0xff]
      %v667 = vld [vmem:[%s3 + $0x158] sm:$0xff]
      %v668 = vld [vmem:[%s3 + $0x160] sm:$0xff]
      %v669 = vld [vmem:[%s3 + $0x168] sm:$0xff]
      %v670 = vld [vmem:[%s3 + $0x170] sm:$0xff]
      %v671 = vld [vmem:[%s3 + $0x178] sm:$0xff]
      %672 = vmatpush.msra.mxu0 %v671
      %673 = vmatpush.msra.mxu0 %v670
      %674 = vmatpush.msra.mxu0 %v669
      %675 = vmatpush.msra.mxu0 %v668
      %676 = vmatpush.msra.mxu0 %v667
      %677 = vmatpush.msra.mxu0 %v666
      %678 = vmatpush.msra.mxu0 %v665
      %679 = vmatpush.msra.mxu0 %v664
      %680 = vmatpush.msra.mxu0 %v663
      %681 = vmatpush.msra.mxu0 %v662
      %682 = vmatpush.msra.mxu0 %v661
      %683 = vmatpush.msra.mxu0 %v660
      %684 = vmatpush.msra.mxu0 %v659
      %685 = vmatpush.msra.mxu0 %v658
      %686 = vmatpush.msra.mxu0 %v657
      %687 = vmatpush.msra.mxu0 %v656
      %688 = vmatmul.f32.gmra.mxu0 %v654
      %v689 = vpop.f32.mrf.mxu0
      %v690 = vadd.f32 0.0, %v689
      %691 = vmatmul.f32.gmra.mxu0 %v655
      %v692 = vpop.f32.mrf.mxu0
      %v693 = vadd.f32 0.0, %v692
      %694 = vdwg.mxu0
      %v695 = vadd.f32 %v649, %v690
      %v696 = vadd.f32 %v652, %v693
      %v697 = vld [vmem:[%s4] sm:$0x1]
      %v699 = vperm.slane %v697, 0
      %v701 = vadd.f32 %v695, %v699
      %v702 = vadd.f32 %v696, %v699
      %703 = vst [vmem:[%s499] sm:$0xff] %v701
      %704 = vst [vmem:[%s499 + $0x8] sm:$0xff] %v702
      %v705 = vsel %vm546, 1, 0
      %v706 = vsel %vm547, 1, 0
      %vm707 = vcmp.eq.s32.totalorder %v705, 1
      %vm708 = vcmp.eq.s32.totalorder %v706, 1
      %v709 = vsel %vm707, %v701, 0.0
      %v710 = vsel %vm708, %v702, 0.0
      %p711 = scmp.eq.s32.totalorder %s26, 0
      // Predicated region
      $region49: #{_lambda_.4} parent=47 // pred_check
        %p712 = pneg %p711
      $region50: #{_lambda_.4} parent=47 // pred_check_branch
        %714 = sbr.rel (%p712) target = $region52
      $region51: #{_lambda_.4} parent=47 // pred_region
        %715 = vst [vmem:[%s503] sm:$0x1] 0.0
        %716 = vst [vmem:[%s506] sm:$0x1] 0.0
      $region52: #{_lambda_.4} parent=47 // pred_fallthru
        _
      %v717 = vld [vmem:[%s503] sm:$0x1]
      %v718 = vadd.f32 %v709, %v710
      %v719 = vrot.slane %v718, 4
      %v720 = vadd.f32 %v718, %v719
      %v721 = vrot.slane %v720, 2
      %v722 = vadd.f32 %v720, %v721
      %v723 = vrot.slane %v722, 1
      %v724 = vadd.f32 %v722, %v723
      %v725 = vadd.f32 %v717, %v724
      %726 = vst [vmem:[%s503] sm:$0x1] %v725
      %v727 = vld [vmem:[%s506] sm:$0x1]
      %v728 = vmul.f32 %v709, %v709
      %v729 = vmul.f32 %v710, %v710
      %v730 = vadd.f32 %v728, %v729
      %v731 = vrot.slane %v730, 4
      %v732 = vadd.f32 %v730, %v731
      %v733 = vrot.slane %v732, 2
      %v734 = vadd.f32 %v732, %v733
      %v735 = vrot.slane %v734, 1
      %v736 = vadd.f32 %v734, %v735
      %v737 = vadd.f32 %v727, %v736
      %738 = vst [vmem:[%s506] sm:$0x1] %v737
      %s739 = smul.u32 2, %s26
      %p740 = scmp.lt.s32.totalorder %s25, 1
      %s741 = scalar_select %p740, %s25, 1
      %p742 = scmp.lt.s32.totalorder %s739, 1
      %s743 = scalar_select %p742, %s739, 1
      %s744 = smul.addr %s741, 2
      %s745 = sadd.s32 %s743, %s744
      %s746 = smul.addr %s745, 8
      %s747 = scalar_lea.vmem %s7, %s746
      %p748 = scmp.lt.s32.totalorder %s25, 1
      %s749 = scalar_select %p748, %s25, 1
      %s750 = scalar_lea.vmem %s8, %s749
      %p751 = scmp.lt.s32.totalorder %s25, 1
      %s752 = scalar_select %p751, %s25, 1
      %s753 = scalar_lea.vmem %s9, %s752
      // Predicated region
      $region53: #{_lambda_.4} parent=47 // pred_check
        %p754 = pneg %p237
      $region54: #{_lambda_.4} parent=47 // pred_check_branch
        %756 = sbr.rel (%p754) target = $region56
      $region55: #{_lambda_.4} parent=47 // pred_region
        %s757 = smul.u32 2, %s26
      $region56: #{_lambda_.4} parent=47 // pred_fallthru
        _
      // Predicated region
      $region57: #{_lambda_.4} parent=47 // pred_check
        %p758 = pneg %p263
      $region58: #{_lambda_.4} parent=47 // pred_check_branch
        %760 = sbr.rel (%p758) target = $region60
      $region59: #{_lambda_.4} parent=47 // pred_region
        _
      $region60: #{_lambda_.4} parent=47 // pred_fallthru
        _
      // Predicated region
      $region61: #{_lambda_.4} parent=47 // pred_check
        %p761 = pneg %p289
      $region62: #{_lambda_.4} parent=47 // pred_check_branch
        %763 = sbr.rel (%p761) target = $region64
      $region63: #{_lambda_.4} parent=47 // pred_region
        _
      $region64: #{_lambda_.4} parent=47 // pred_fallthru
        _
    $region48: #{_lambda_.4} parent=5 // pred_fallthru
      _
    %p764 = scmp.le.s32.totalorder 2, %s16
    // Predicated region
    $region65: #{_lambda_.4} parent=5 // pred_check
      %p765 = pneg %p764
    $region66: #{_lambda_.4} parent=5 // pred_check_branch
      %767 = sbr.rel (%p765) target = $region68
    $region67: #{_lambda_.4} parent=5 // pred_region
      %s768 = ssub.s32 %s16, 2
      // Predicated region
      $region69: #{_lambda_.4} parent=67 // pred_check
        %p769 = pneg %p243
      $region70: #{_lambda_.4} parent=67 // pred_check_branch
        %771 = sbr.rel (%p769) target = $region72
      $region71: #{_lambda_.4} parent=67 // pred_region
        %s772 = smul.u32 2, %s28
        %p773 = scmp.lt.s32.totalorder %s27, 1
        %s774 = scalar_select %p773, %s27, 1
        %p775 = scmp.lt.s32.totalorder %s772, 1
        %s776 = scalar_select %p775, %s772, 1
        %s777 = smul.addr %s774, 2
        %s778 = sadd.s32 %s776, %s777
        %s779 = smul.addr %s778, 8
        %s780 = scalar_lea.vmem %s7, %s779
      $region72: #{_lambda_.4} parent=67 // pred_fallthru
        _
      // Predicated region
      $region73: #{_lambda_.4} parent=67 // pred_check
        %p781 = pneg %p269
      $region74: #{_lambda_.4} parent=67 // pred_check_branch
        %783 = sbr.rel (%p781) target = $region76
      $region75: #{_lambda_.4} parent=67 // pred_region
        %p784 = scmp.lt.s32.totalorder %s27, 1
        %s785 = scalar_select %p784, %s27, 1
        %s786 = scalar_lea.vmem %s8, %s785
      $region76: #{_lambda_.4} parent=67 // pred_fallthru
        _
      // Predicated region
      $region77: #{_lambda_.4} parent=67 // pred_check
        %p787 = pneg %p295
      $region78: #{_lambda_.4} parent=67 // pred_check_branch
        %789 = sbr.rel (%p787) target = $region80
      $region79: #{_lambda_.4} parent=67 // pred_region
        %p790 = scmp.lt.s32.totalorder %s27, 1
        %s791 = scalar_select %p790, %s27, 1
        %s792 = scalar_lea.vmem %s9, %s791
      $region80: #{_lambda_.4} parent=67 // pred_fallthru
        _
    $region68: #{_lambda_.4} parent=5 // pred_fallthru
      _
  $region6: #{_lambda_.4} parent=0 // loop_footer
    %s20 = sadd.s32 1, %s16
  $region7: #{_lambda_.4} parent=0 // loop_footer_branch
    %15 = sbr.rel target = $region3
  $region8: #{_lambda_.4} parent=0 // loop_exit
    _

</llo_original>
